<compile_context>
chip_gen: v6e
topology: v6e:2x2x1
jax: 0.10.0
libtpu: 0.0.40
codegen_flags: <defaults>
</compile_context>

<pallas_src>
import functools
import inspect

import numpy as np
import jax
import jax.numpy as jnp
from jax import lax
from jax.experimental import pallas as pl
from jax.experimental.pallas import tpu as pltpu

NUM_GROUPS = 32
EPS = 1e-6


# ---------------------------------------------------------------------------
# Capability probe: single-buffered constant operands (pl.Buffered(1)).
# Falls back to default double-buffering if the installed JAX/Mosaic rejects it.
# ---------------------------------------------------------------------------
@functools.lru_cache(maxsize=None)
def _buffered_consts_supported():
    if not hasattr(pl, "Buffered"):
        return False
    try:
        if "pipeline_mode" not in inspect.signature(pl.BlockSpec).parameters:
            return False
    except (TypeError, ValueError):
        return False

    def probe_kernel(c_ref, x_ref, o_ref):
        o_ref[...] = x_ref[...] + c_ref[...]

    try:
        fn = pl.pallas_call(
            probe_kernel,
            out_shape=jax.ShapeDtypeStruct((8, 128), jnp.float32),
            grid=(2,),
            in_specs=[
                pl.BlockSpec((8, 128), lambda i: (0, 0),
                             pipeline_mode=pl.Buffered(1)),
                pl.BlockSpec((8, 128), lambda i: (0, 0)),
            ],
            out_specs=pl.BlockSpec((8, 128), lambda i: (0, 0)),
        )
        jax.block_until_ready(
            fn(jnp.zeros((8, 128), jnp.float32), jnp.ones((8, 128), jnp.float32)))
        return True
    except Exception:
        return False


def _const_spec(shape):
    """BlockSpec for an operand whose block index never changes across the grid."""
    index_map = lambda i: (0,) * len(shape)
    if _buffered_consts_supported():
        # Single-buffer resident weights: default double-buffering only wastes
        # VMEM for operands with a constant block index (matters most on v7x).
        return pl.BlockSpec(shape, index_map, pipeline_mode=pl.Buffered(1))
    return pl.BlockSpec(shape, index_map)


def _vmem_limit_bytes(C, T):
    """Footprint-derived scoped-VMEM limit with per-generation headroom caps."""
    try:
        kind = jax.devices()[0].device_kind.lower()
    except Exception:
        kind = ""
    # Leave headroom below physical VMEM (64 MiB/TC on v7x, 128 MiB on v5e/v6e).
    cap = (56 << 20) if ("v7" in kind or "7x" in kind) else (100 << 20)
    f32, bf16 = 4, 2
    est = (
        2 * 2 * C * T * f32                                            # x + out blocks (2x buffered)
        + 2 * (4 * C * C * bf16 + 2 * C * NUM_GROUPS * f32 + 8 * C * f32)  # weights / constants
        + T * T * (3 * f32 + bf16)                                     # st / e / wt (+ bf16 copy)
        + 12 * C * T * f32                                             # h, qkv, attn, h2, casts
    )
    return int(min(cap, max(32 << 20, 2 * est)))


def _attn_kernel(x_ref, mask_ref, gamma_ref, beta_ref, expand_ref, pool_ref,
                 wqkv_ref, bqkv_ref, wp_ref, bp_ref, o_ref, *, apply_reweight):
    x = x_ref[0]                      # (C, T) f32: residual source
    mask = mask_ref[0]                # (T, 1) f32: key mask (keys on the sublane axis)
    C, T = x.shape
    inv_n = 1.0 / float((C // NUM_GROUPS) * T)

    # --- GroupNorm(32, C, eps=1e-6), two-pass (centered second moment) -------
    xs = jnp.sum(x, axis=1, keepdims=True)                                 # (C,1)
    mean_c = jnp.dot(expand_ref[...],
                     jnp.dot(pool_ref[...], xs,
                             preferred_element_type=jnp.float32) * inv_n,
                     preferred_element_type=jnp.float32)                   # (C,1)
    xc = x - mean_c
    d2 = jnp.sum(xc * xc, axis=1, keepdims=True)                           # (C,1)
    var_c = jnp.dot(expand_ref[...],
                    jnp.dot(pool_ref[...], d2,
                            preferred_element_type=jnp.float32) * inv_n,
                    preferred_element_type=jnp.float32)                    # (C,1)
    chan_scale = lax.rsqrt(var_c + EPS) * gamma_ref[...]                   # (C,1) per-channel
    h = xc * chan_scale + beta_ref[...]                                    # single (C,T) pass

    # --- fused q/k/v 1x1-conv projection; C**-0.5 already folded into q ------
    h_bf = h.astype(jnp.bfloat16)
    qkv = jnp.dot(wqkv_ref[...], h_bf,
                  preferred_element_type=jnp.float32) + bqkv_ref[...]      # (3C, T)
    q_bf = qkv[0:C].astype(jnp.bfloat16)
    k_bf = qkv[C:2 * C].astype(jnp.bfloat16)
    v_bf = qkv[2 * C:3 * C].astype(jnp.bfloat16)

    # --- scores in key-major layout: st[j, i] = sum_c k[c, j] * q[c, i] ------
    # (k^T @ q via dot_general: no explicit f32 transpose, and the resulting
    #  (T,T) weights are consumed untransposed by both matmuls below.)
    st = lax.dot_general(k_bf, q_bf, (((0,), (0,)), ((), ())),
                         preferred_element_type=jnp.float32)               # (Tk, Tq)

    # --- softmax over keys (axis 0) with the mask folded into the normalizer -
    st = st - jnp.max(st, axis=0, keepdims=True)
    e = jnp.exp(st)
    if apply_reweight:
        # softmax * mask renormalized == (e*mask)/sum(e*mask). A fully-masked
        # row divides by zero -> NaN, mirroring the PyTorch module.
        em = e * mask
        wt = em * pl.reciprocal(jnp.sum(em, axis=0, keepdims=True), approx=True)
    else:
        wt = (e * pl.reciprocal(jnp.sum(e, axis=0, keepdims=True), approx=True)) * mask
    # TODO(synk): run this elementwise chain in bf16 on v6e/v7x (not v5e).

    # --- attn[c, i] = sum_j v[c, j] * wt[j, i]; proj_out; residual -----------
    attn = jnp.dot(v_bf, wt.astype(jnp.bfloat16),
                   preferred_element_type=jnp.float32)                     # (C, T)
    h2 = jnp.dot(wp_ref[...], attn.astype(jnp.bfloat16),
                 preferred_element_type=jnp.float32) + bp_ref[...]         # (C, T)
    o_ref[0] = x + h2


def prepare_params(params):
    """One-time weight prep (fuse/cast/reshape), hoisted out of the per-call path."""
    C = params["wq"].shape[0]
    G = NUM_GROUPS
    assert C % G == 0, "GroupNorm(32, C) requires C % 32 == 0"
    scale = float(C) ** -0.5          # attention scale folded into q weight/bias

    wq = params["wq"][:, :, 0].astype(jnp.float32) * scale
    wk = params["wk"][:, :, 0].astype(jnp.float32)
    wv = params["wv"][:, :, 0].astype(jnp.float32)
    bq = params["bq"].astype(jnp.float32) * scale
    bk = params["bk"].astype(jnp.float32)
    bv = params["bv"].astype(jnp.float32)

    group_ids = np.arange(C) // (C // G)
    expand = jnp.asarray(group_ids[:, None] == np.arange(G)[None, :],
                         dtype=jnp.float32)                                 # (C, G)

    return {
        "gamma": params["gamma"].reshape(C, 1).astype(jnp.float32),
        "beta": params["beta"].reshape(C, 1).astype(jnp.float32),
        "expand": expand,                                                   # (C, G)
        "pool": expand.T,                                                   # (G, C)
        "wqkv": jnp.concatenate([wq, wk, wv], axis=0).astype(jnp.bfloat16), # (3C, C)
        "bqkv": jnp.concatenate([bq, bk, bv], axis=0).reshape(3 * C, 1),    # (3C, 1) f32
        "wp": params["wp"][:, :, 0].astype(jnp.bfloat16),                   # (C, C)
        "bp": params["bp"].reshape(C, 1).astype(jnp.float32),               # (C, 1)
    }


def biased_self_attn_block(x, mask, prepared_params, *, apply_reweight=False):
    """x: (B, C, T) Conv1d NCT layout; mask: (B, T) or None. Returns (B, C, T) f32."""
    B, C, T = x.shape
    G = NUM_GROUPS
    x = x.astype(jnp.float32)
    if mask is None:
        mask = jnp.ones((B, T), jnp.float32)
    mask_k = mask.astype(jnp.float32).reshape(B, T, 1)   # keys on the sublane axis

    p = prepared_params
    kernel = functools.partial(_attn_kernel, apply_reweight=apply_reweight)

    out = pl.pallas_call(
        kernel,
        out_shape=jax.ShapeDtypeStruct((B, C, T), jnp.float32),
        grid=(B,),
        in_specs=[
            pl.BlockSpec((1, C, T), lambda i: (i, 0, 0)),   # x (per-batch block)
            pl.BlockSpec((1, T, 1), lambda i: (i, 0, 0)),   # key mask
            _const_spec((C, 1)),                            # gamma
            _const_spec((C, 1)),                            # beta
            _const_spec((C, G)),                            # group expand
            _const_spec((G, C)),                            # group pool
            _const_spec((3 * C, C)),                        # fused qkv weight (bf16)
            _const_spec((3 * C, 1)),                        # fused qkv bias
            _const_spec((C, C)),                            # proj_out weight (bf16)
            _const_spec((C, 1)),                            # proj_out bias
        ],
        out_specs=pl.BlockSpec((1, C, T), lambda i: (i, 0, 0)),
        compiler_params=pltpu.CompilerParams(
            dimension_semantics=("parallel",),
            vmem_limit_bytes=_vmem_limit_bytes(C, T),
        ),
    )(x, mask_k, p["gamma"], p["beta"], p["expand"], p["pool"],
      p["wqkv"], p["bqkv"], p["wp"], p["bp"])
    return out


def reference(x, mask, params, *, apply_reweight=False):
    """Pure-JAX f32 replica of the PyTorch forward (NCT layout) for validation."""
    B, C, T = x.shape
    G = NUM_GROUPS
    x = x.astype(jnp.float32)
    xg = x.reshape(B, G, C // G, T)
    mean = xg.mean(axis=(2, 3), keepdims=True)
    var = xg.var(axis=(2, 3), keepdims=True)
    h = ((xg - mean) / jnp.sqrt(var + EPS)).reshape(B, C, T)
    h = h * params["gamma"].reshape(1, C, 1) + params["beta"].reshape(1, C, 1)

    def conv1x1(w, b, z):
        return jnp.einsum("oi,bit->bot", w[:, :, 0], z) + b.reshape(1, C, 1)

    q = conv1x1(params["wq"], params["bq"], h)
    k = conv1x1(params["wk"], params["bk"], h)
    v = conv1x1(params["wv"], params["bv"], h)
    w_ = jnp.einsum("bci,bcj->bij", q, k) * (float(C) ** -0.5)
    w_ = jax.nn.softmax(w_, axis=2)
    w_ = w_ * mask[:, None, :]
    if apply_reweight:
        w_ = w_ / jnp.sum(w_, axis=-1, keepdims=True)
    hh = jnp.einsum("bcj,bij->bci", v, w_)
    hh = conv1x1(params["wp"], params["bp"], hh)
    return x + hh


if __name__ == "__main__":
    # Small but lane-dense shapes: C multiple of 32 (GroupNorm), T multiple of 128.
    B, C, T = 2, 64, 128

    key = jax.random.PRNGKey(0)
    ks = jax.random.split(key, 12)
    params = {
        "gamma": 1.0 + 0.1 * jax.random.normal(ks[0], (C,), jnp.float32),
        "beta": 0.1 * jax.random.normal(ks[1], (C,), jnp.float32),
        "wq": 0.1 * jax.random.normal(ks[2], (C, C, 1), jnp.float32),
        "bq": 0.05 * jax.random.normal(ks[3], (C,), jnp.float32),
        "wk": 0.1 * jax.random.normal(ks[4], (C, C, 1), jnp.float32),
        "bk": 0.05 * jax.random.normal(ks[5], (C,), jnp.float32),
        "wv": 0.1 * jax.random.normal(ks[6], (C, C, 1), jnp.float32),
        "bv": 0.05 * jax.random.normal(ks[7], (C,), jnp.float32),
        "wp": 0.1 * jax.random.normal(ks[8], (C, C, 1), jnp.float32),
        "bp": 0.05 * jax.random.normal(ks[9], (C,), jnp.float32),
    }
    x = jax.random.normal(ks[10], (B, C, T), jnp.float32)
    mask = (jax.random.uniform(ks[11], (B, T)) > 0.3).astype(jnp.float32)

    prepared = prepare_params(params)   # hoisted: weight fuse/cast done once

    # bf16 MXU operands + approx reciprocal => relaxed tolerance vs. f32 reference.
    for reweight in (False, True):
        out = jax.block_until_ready(
            biased_self_attn_block(x, mask, prepared, apply_reweight=reweight))
        ref = jax.block_until_ready(
            reference(x, mask, params, apply_reweight=reweight))
        np.testing.assert_allclose(np.asarray(out), np.asarray(ref),
                                   rtol=2e-2, atol=5e-2)

    print("KERNEL_OK")
</pallas_src>

<mosaic_0001>
module attributes {stable_mosaic.version = 11 : i64} {
  func.func @probe_kernel(%arg0: i32, %arg1: memref<8x128xf32, #tpu.memory_space<vmem>>, %arg2: memref<8x128xf32, #tpu.memory_space<vmem>>, %arg3: memref<8x128xf32, #tpu.memory_space<vmem>>) attributes {dimension_semantics = [#tpu.dimension_semantics<arbitrary>], iteration_bounds = array<i64: 2>, scalar_prefetch = 0 : i64, scratch_operands = 0 : i64, tpu.core_type = #tpu.core_type<tc>, window_params = [{pipeline_mode = #tpu.pipeline_mode<synchronous>, transform_indices = @transform_0, window_bounds = array<i64: 8, 128>}, {pipeline_mode = #tpu.pipeline_mode<synchronous>, transform_indices = @transform_1, window_bounds = array<i64: 8, 128>}, {pipeline_mode = #tpu.pipeline_mode<synchronous>, transform_indices = @transform_2, window_bounds = array<i64: 8, 128>}]} {
    %c0 = arith.constant 0 : index
    %c0_0 = arith.constant 0 : index
    %0 = vector.load %arg2[%c0, %c0_0] : memref<8x128xf32, #tpu.memory_space<vmem>>, vector<8x128xf32>
    %c0_1 = arith.constant 0 : index
    %c0_2 = arith.constant 0 : index
    %1 = vector.load %arg1[%c0_1, %c0_2] : memref<8x128xf32, #tpu.memory_space<vmem>>, vector<8x128xf32>
    %2 = arith.addf %0, %1 : vector<8x128xf32>
    %c0_3 = arith.constant 0 : index
    %c0_4 = arith.constant 0 : index
    %3 = vector.load %arg3[%c0_3, %c0_4] : memref<8x128xf32, #tpu.memory_space<vmem>>, vector<8x128xf32>
    tpu.vector_store %arg3[%c0_3, %c0_4], %2 {strides = array<i32>} : memref<8x128xf32, #tpu.memory_space<vmem>>, vector<8x128xf32>,
    return
  }
  func.func @transform_0(%arg0: i32) -> (i32, i32) {
    %c0_i32 = arith.constant 0 : i32
    %c0_i32_0 = arith.constant 0 : i32
    %c0_i32_1 = arith.constant 0 : i32
    return %c0_i32, %c0_i32_0 : i32, i32
  }
  func.func @transform_1(%arg0: i32) -> (i32, i32) {
    %c0_i32 = arith.constant 0 : i32
    %c0_i32_0 = arith.constant 0 : i32
    %c0_i32_1 = arith.constant 0 : i32
    return %c0_i32, %c0_i32_0 : i32, i32
  }
  func.func @transform_2(%arg0: i32) -> (i32, i32) {
    %c0_i32 = arith.constant 0 : i32
    %c0_i32_0 = arith.constant 0 : i32
    %c0_i32_1 = arith.constant 0 : i32
    return %c0_i32, %c0_i32_0 : i32, i32
  }
}

module attributes {stable_mosaic.version = 11 : i64} {
  func.func @_attn_kernel(%arg0: i32, %arg1: memref<1x64x128xf32, #tpu.memory_space<vmem>>, %arg2: memref<1x128x1xf32, #tpu.memory_space<vmem>>, %arg3: memref<64x1xf32, #tpu.memory_space<vmem>>, %arg4: memref<64x1xf32, #tpu.memory_space<vmem>>, %arg5: memref<64x32xf32, #tpu.memory_space<vmem>>, %arg6: memref<32x64xf32, #tpu.memory_space<vmem>>, %arg7: memref<192x64xbf16, #tpu.memory_space<vmem>>, %arg8: memref<192x1xf32, #tpu.memory_space<vmem>>, %arg9: memref<64x64xbf16, #tpu.memory_space<vmem>>, %arg10: memref<64x1xf32, #tpu.memory_space<vmem>>, %arg11: memref<1x64x128xf32, #tpu.memory_space<vmem>>) attributes {dimension_semantics = [#tpu.dimension_semantics<parallel>], iteration_bounds = array<i64: 2>, scalar_prefetch = 0 : i64, scratch_operands = 0 : i64, tpu.core_type = #tpu.core_type<tc>, window_params = [{transform_indices = @transform_0, window_bounds = array<i64: 1, 64, 128>}, {transform_indices = @transform_1, window_bounds = array<i64: 1, 128, 1>}, {pipeline_mode = #tpu.pipeline_mode<synchronous>, transform_indices = @transform_2, window_bounds = array<i64: 64, 1>}, {pipeline_mode = #tpu.pipeline_mode<synchronous>, transform_indices = @transform_3, window_bounds = array<i64: 64, 1>}, {pipeline_mode = #tpu.pipeline_mode<synchronous>, transform_indices = @transform_4, window_bounds = array<i64: 64, 32>}, {pipeline_mode = #tpu.pipeline_mode<synchronous>, transform_indices = @transform_5, window_bounds = array<i64: 32, 64>}, {pipeline_mode = #tpu.pipeline_mode<synchronous>, transform_indices = @transform_6, window_bounds = array<i64: 192, 64>}, {pipeline_mode = #tpu.pipeline_mode<synchronous>, transform_indices = @transform_7, window_bounds = array<i64: 192, 1>}, {pipeline_mode = #tpu.pipeline_mode<synchronous>, transform_indices = @transform_8, window_bounds = array<i64: 64, 64>}, {pipeline_mode = #tpu.pipeline_mode<synchronous>, transform_indices = @transform_9, window_bounds = array<i64: 64, 1>}, {transform_indices = @transform_10, window_bounds = array<i64: 1, 64, 128>}]} {
    %c0 = arith.constant 0 : index
    %c0_0 = arith.constant 0 : index
    %c0_1 = arith.constant 0 : index
    %0 = vector.load %arg1[%c0, %c0_0, %c0_1] : memref<1x64x128xf32, #tpu.memory_space<vmem>>, vector<1x64x128xf32>
    %1 = vector.shape_cast %0 : vector<1x64x128xf32> to vector<64x128xf32>
    %c0_2 = arith.constant 0 : index
    %c0_3 = arith.constant 0 : index
    %c0_4 = arith.constant 0 : index
    %2 = vector.load %arg2[%c0_2, %c0_3, %c0_4] : memref<1x128x1xf32, #tpu.memory_space<vmem>>, vector<1x128x1xf32>
    %3 = vector.shape_cast %2 : vector<1x128x1xf32> to vector<128x1xf32>
    %cst = arith.constant dense<0.000000e+00> : vector<64xf32>
    %4 = vector.multi_reduction <add>, %1, %cst [1] : vector<64x128xf32> to vector<64xf32>
    %5 = vector.shape_cast %4 : vector<64xf32> to vector<64x1xf32>
    %c0_5 = arith.constant 0 : index
    %c0_6 = arith.constant 0 : index
    %6 = vector.load %arg5[%c0_5, %c0_6] : memref<64x32xf32, #tpu.memory_space<vmem>>, vector<64x32xf32>
    %c0_7 = arith.constant 0 : index
    %c0_8 = arith.constant 0 : index
    %7 = vector.load %arg6[%c0_7, %c0_8] : memref<32x64xf32, #tpu.memory_space<vmem>>, vector<32x64xf32>
    %cst_9 = arith.constant dense<0.000000e+00> : vector<32x1xf32>
    %8 = tpu.matmul %7, %5, %cst_9 {dimension_numbers = #tpu.dot_dimension_numbers<[1], [0], [0], [1], [0, 0, 1, 1], [], []>} : vector<32x64xf32>, vector<64x1xf32>, vector<32x1xf32> -> vector<32x1xf32>
    %cst_10 = arith.constant 3.906250e-03 : f32
    %9 = vector.broadcast %cst_10 : f32 to vector<32x1xf32>
    %10 = arith.mulf %8, %9 : vector<32x1xf32>
    %cst_11 = arith.constant dense<0.000000e+00> : vector<64x1xf32>
    %11 = tpu.matmul %6, %10, %cst_11 {dimension_numbers = #tpu.dot_dimension_numbers<[1], [0], [0], [1], [0, 0, 1, 1], [], []>} : vector<64x32xf32>, vector<32x1xf32>, vector<64x1xf32> -> vector<64x1xf32>
    %12 = vector.broadcast %11 : vector<64x1xf32> to vector<64x128xf32>
    %13 = arith.subf %1, %12 : vector<64x128xf32>
    %14 = arith.mulf %13, %13 : vector<64x128xf32>
    %cst_12 = arith.constant dense<0.000000e+00> : vector<64xf32>
    %15 = vector.multi_reduction <add>, %14, %cst_12 [1] : vector<64x128xf32> to vector<64xf32>
    %16 = vector.shape_cast %15 : vector<64xf32> to vector<64x1xf32>
    %c0_13 = arith.constant 0 : index
    %c0_14 = arith.constant 0 : index
    %17 = vector.load %arg5[%c0_13, %c0_14] : memref<64x32xf32, #tpu.memory_space<vmem>>, vector<64x32xf32>
    %c0_15 = arith.constant 0 : index
    %c0_16 = arith.constant 0 : index
    %18 = vector.load %arg6[%c0_15, %c0_16] : memref<32x64xf32, #tpu.memory_space<vmem>>, vector<32x64xf32>
    %cst_17 = arith.constant dense<0.000000e+00> : vector<32x1xf32>
    %19 = tpu.matmul %18, %16, %cst_17 {dimension_numbers = #tpu.dot_dimension_numbers<[1], [0], [0], [1], [0, 0, 1, 1], [], []>} : vector<32x64xf32>, vector<64x1xf32>, vector<32x1xf32> -> vector<32x1xf32>
    %cst_18 = arith.constant 3.906250e-03 : f32
    %20 = vector.broadcast %cst_18 : f32 to vector<32x1xf32>
    %21 = arith.mulf %19, %20 : vector<32x1xf32>
    %cst_19 = arith.constant dense<0.000000e+00> : vector<64x1xf32>
    %22 = tpu.matmul %17, %21, %cst_19 {dimension_numbers = #tpu.dot_dimension_numbers<[1], [0], [0], [1], [0, 0, 1, 1], [], []>} : vector<64x32xf32>, vector<32x1xf32>, vector<64x1xf32> -> vector<64x1xf32>
    %cst_20 = arith.constant 9.99999997E-7 : f32
    %23 = vector.broadcast %cst_20 : f32 to vector<64x1xf32>
    %24 = arith.addf %22, %23 : vector<64x1xf32>
    %25 = math.rsqrt %24 : vector<64x1xf32>
    %c0_21 = arith.constant 0 : index
    %c0_22 = arith.constant 0 : index
    %26 = vector.load %arg3[%c0_21, %c0_22] : memref<64x1xf32, #tpu.memory_space<vmem>>, vector<64x1xf32>
    %27 = arith.mulf %25, %26 : vector<64x1xf32>
    %28 = vector.broadcast %27 : vector<64x1xf32> to vector<64x128xf32>
    %29 = arith.mulf %13, %28 : vector<64x128xf32>
    %c0_23 = arith.constant 0 : index
    %c0_24 = arith.constant 0 : index
    %30 = vector.load %arg4[%c0_23, %c0_24] : memref<64x1xf32, #tpu.memory_space<vmem>>, vector<64x1xf32>
    %31 = vector.broadcast %30 : vector<64x1xf32> to vector<64x128xf32>
    %32 = arith.addf %29, %31 : vector<64x128xf32>
    %33 = arith.truncf %32 : vector<64x128xf32> to vector<64x128xbf16>
    %c0_25 = arith.constant 0 : index
    %c0_26 = arith.constant 0 : index
    %34 = vector.load %arg7[%c0_25, %c0_26] : memref<192x64xbf16, #tpu.memory_space<vmem>>, vector<192x64xbf16>
    %cst_27 = arith.constant dense<0.000000e+00> : vector<192x128xf32>
    %35 = tpu.matmul %34, %33, %cst_27 {dimension_numbers = #tpu.dot_dimension_numbers<[1], [0], [0], [1], [0, 0, 1, 1], [], []>} : vector<192x64xbf16>, vector<64x128xbf16>, vector<192x128xf32> -> vector<192x128xf32>
    %c0_28 = arith.constant 0 : index
    %c0_29 = arith.constant 0 : index
    %36 = vector.load %arg8[%c0_28, %c0_29] : memref<192x1xf32, #tpu.memory_space<vmem>>, vector<192x1xf32>
    %37 = vector.broadcast %36 : vector<192x1xf32> to vector<192x128xf32>
    %38 = arith.addf %35, %37 : vector<192x128xf32>
    %39 = vector.extract_strided_slice %38 {offsets = [0, 0], sizes = [64, 128], strides = [1, 1]} : vector<192x128xf32> to vector<64x128xf32>
    %40 = arith.truncf %39 : vector<64x128xf32> to vector<64x128xbf16>
    %41 = vector.extract_strided_slice %38 {offsets = [64, 0], sizes = [64, 128], strides = [1, 1]} : vector<192x128xf32> to vector<64x128xf32>
    %42 = arith.truncf %41 : vector<64x128xf32> to vector<64x128xbf16>
    %43 = vector.extract_strided_slice %38 {offsets = [128, 0], sizes = [64, 128], strides = [1, 1]} : vector<192x128xf32> to vector<64x128xf32>
    %44 = arith.truncf %43 : vector<64x128xf32> to vector<64x128xbf16>
    %cst_30 = arith.constant dense<0.000000e+00> : vector<128x128xf32>
    %45 = tpu.matmul %42, %40, %cst_30 {dimension_numbers = #tpu.dot_dimension_numbers<[0], [0], [1], [1], [0, 1, 1, 1], [], []>} : vector<64x128xbf16>, vector<64x128xbf16>, vector<128x128xf32> -> vector<128x128xf32>
    %cst_31 = arith.constant dense<0xFF800000> : vector<128xf32>
    %46 = vector.multi_reduction <maximumf>, %45, %cst_31 [0] : vector<128x128xf32> to vector<128xf32>
    %47 = vector.shape_cast %46 : vector<128xf32> to vector<1x128xf32>
    %48 = vector.broadcast %47 : vector<1x128xf32> to vector<128x128xf32>
    %49 = arith.subf %45, %48 : vector<128x128xf32>
    %50 = math.exp %49 : vector<128x128xf32>
    %cst_32 = arith.constant dense<0.000000e+00> : vector<128xf32>
    %51 = vector.multi_reduction <add>, %50, %cst_32 [0] : vector<128x128xf32> to vector<128xf32>
    %52 = vector.shape_cast %51 : vector<128xf32> to vector<1x128xf32>
    %53 = tpu.reciprocal %52 {approx = true} : vector<1x128xf32> -> vector<1x128xf32>
    %54 = vector.broadcast %53 : vector<1x128xf32> to vector<128x128xf32>
    %55 = arith.mulf %50, %54 : vector<128x128xf32>
    %56 = vector.broadcast %3 : vector<128x1xf32> to vector<128x128xf32>
    %57 = arith.mulf %55, %56 : vector<128x128xf32>
    %58 = arith.truncf %57 : vector<128x128xf32> to vector<128x128xbf16>
    %cst_33 = arith.constant dense<0.000000e+00> : vector<64x128xf32>
    %59 = tpu.matmul %44, %58, %cst_33 {dimension_numbers = #tpu.dot_dimension_numbers<[1], [0], [0], [1], [0, 0, 1, 1], [], []>} : vector<64x128xbf16>, vector<128x128xbf16>, vector<64x128xf32> -> vector<64x128xf32>
    %c0_34 = arith.constant 0 : index
    %c0_35 = arith.constant 0 : index
    %60 = vector.load %arg9[%c0_34, %c0_35] : memref<64x64xbf16, #tpu.memory_space<vmem>>, vector<64x64xbf16>
    %61 = arith.truncf %59 : vector<64x128xf32> to vector<64x128xbf16>
    %cst_36 = arith.constant dense<0.000000e+00> : vector<64x128xf32>
    %62 = tpu.matmul %60, %61, %cst_36 {dimension_numbers = #tpu.dot_dimension_numbers<[1], [0], [0], [1], [0, 0, 1, 1], [], []>} : vector<64x64xbf16>, vector<64x128xbf16>, vector<64x128xf32> -> vector<64x128xf32>
    %c0_37 = arith.constant 0 : index
    %c0_38 = arith.constant 0 : index
    %63 = vector.load %arg10[%c0_37, %c0_38] : memref<64x1xf32, #tpu.memory_space<vmem>>, vector<64x1xf32>
    %64 = vector.broadcast %63 : vector<64x1xf32> to vector<64x128xf32>
    %65 = arith.addf %62, %64 : vector<64x128xf32>
    %66 = arith.addf %1, %65 : vector<64x128xf32>
    %c0_39 = arith.constant 0 : index
    %c0_40 = arith.constant 0 : index
    %c0_41 = arith.constant 0 : index
    %67 = vector.load %arg11[%c0_39, %c0_40, %c0_41] : memref<1x64x128xf32, #tpu.memory_space<vmem>>, vector<1x64x128xf32>
    %68 = vector.shape_cast %67 : vector<1x64x128xf32> to vector<64x128xf32>
    %69 = vector.shape_cast %66 : vector<64x128xf32> to vector<1x64x128xf32>
    tpu.vector_store %arg11[%c0_39, %c0_40, %c0_41], %69 {strides = array<i32>} : memref<1x64x128xf32, #tpu.memory_space<vmem>>, vector<1x64x128xf32>,
    return
  }
  func.func @transform_0(%arg0: i32) -> (i32, i32, i32) {
    %c0_i32 = arith.constant 0 : i32
    %c0_i32_0 = arith.constant 0 : i32
    %c0_i32_1 = arith.constant 0 : i32
    return %arg0, %c0_i32, %c0_i32_0 : i32, i32, i32
  }
  func.func @transform_1(%arg0: i32) -> (i32, i32, i32) {
    %c0_i32 = arith.constant 0 : i32
    %c0_i32_0 = arith.constant 0 : i32
    %c0_i32_1 = arith.constant 0 : i32
    return %arg0, %c0_i32, %c0_i32_0 : i32, i32, i32
  }
  func.func @transform_2(%arg0: i32) -> (i32, i32) {
    %c0_i32 = arith.constant 0 : i32
    %c0_i32_0 = arith.constant 0 : i32
    %c0_i32_1 = arith.constant 0 : i32
    return %c0_i32, %c0_i32_0 : i32, i32
  }
  func.func @transform_3(%arg0: i32) -> (i32, i32) {
    %c0_i32 = arith.constant 0 : i32
    %c0_i32_0 = arith.constant 0 : i32
    %c0_i32_1 = arith.constant 0 : i32
    return %c0_i32, %c0_i32_0 : i32, i32
  }
  func.func @transform_4(%arg0: i32) -> (i32, i32) {
    %c0_i32 = arith.constant 0 : i32
    %c0_i32_0 = arith.constant 0 : i32
    %c0_i32_1 = arith.constant 0 : i32
    return %c0_i32, %c0_i32_0 : i32, i32
  }
  func.func @transform_5(%arg0: i32) -> (i32, i32) {
    %c0_i32 = arith.constant 0 : i32
    %c0_i32_0 = arith.constant 0 : i32
    %c0_i32_1 = arith.constant 0 : i32
    return %c0_i32, %c0_i32_0 : i32, i32
  }
  func.func @transform_6(%arg0: i32) -> (i32, i32) {
    %c0_i32 = arith.constant 0 : i32
    %c0_i32_0 = arith.constant 0 : i32
    %c0_i32_1 = arith.constant 0 : i32
    return %c0_i32, %c0_i32_0 : i32, i32
  }
  func.func @transform_7(%arg0: i32) -> (i32, i32) {
    %c0_i32 = arith.constant 0 : i32
    %c0_i32_0 = arith.constant 0 : i32
    %c0_i32_1 = arith.constant 0 : i32
    return %c0_i32, %c0_i32_0 : i32, i32
  }
  func.func @transform_8(%arg0: i32) -> (i32, i32) {
    %c0_i32 = arith.constant 0 : i32
    %c0_i32_0 = arith.constant 0 : i32
    %c0_i32_1 = arith.constant 0 : i32
    return %c0_i32, %c0_i32_0 : i32, i32
  }
  func.func @transform_9(%arg0: i32) -> (i32, i32) {
    %c0_i32 = arith.constant 0 : i32
    %c0_i32_0 = arith.constant 0 : i32
    %c0_i32_1 = arith.constant 0 : i32
    return %c0_i32, %c0_i32_0 : i32, i32
  }
  func.func @transform_10(%arg0: i32) -> (i32, i32, i32) {
    %c0_i32 = arith.constant 0 : i32
    %c0_i32_0 = arith.constant 0 : i32
    %c0_i32_1 = arith.constant 0 : i32
    return %arg0, %c0_i32, %c0_i32_0 : i32, i32, i32
  }
}

</mosaic_0001>

<llo_original>
// kernel: tpu_custom_call.1
$region0: #{tpu_custom_call.1}
  #allocation0 [shape = 'u32[]', space=smem, size = 0x4, offset = 0x4, fixed_abs, tag = 'smem constant byte address 0x4 - core index']
  #allocation1 [shape = 'u32[144,128]{1,0:T(1,128)}', space=vmem, size = 0x12000, scoped, tag = 'internal scratch']
  %s0 = inlined_call_operand.hbm [shape: f32[8,128], index: 0, kind: input, shape index: {}]
  %s1 = inlined_call_operand.hbm [shape: f32[8,128], index: 1, kind: input, shape index: {}]
  %s2 = inlined_call_operand.hbm [shape: f32[8,128], index: 2, kind: output, shape index: {}]
  %s3 = sld [smem:[#allocation0]]
  $region49: #{tpu_custom_call.1} parent=0
    _
  %s5 = ssub.s32 1, %s3
  %s6 = scalar_select 0, %s5, %s3
  $region1: #{tpu_custom_call.1} parent=0
    #allocation2 [shape = 'u8[4096]{0}', space=vmem, size = 0x1000, scoped, tag = 'input window, operand 0, single buffered']
    #allocation3 [shape = 's32[2]{0}', space=sflag, size = 0x8, scoped, tag = 'scoped memory for tpu_custom_call.1']
    #allocation4 [shape = 's32[2]{0}', space=sflag, size = 0x8, scoped, tag = 'scoped memory for tpu_custom_call.1']
    #allocation5 [shape = 'u8[4096]{0}', space=vmem, size = 0x1000, scoped, tag = 'input window, operand 1, single buffered']
    #allocation6 [shape = 's32[1]{0}', space=sflag, size = 0x4, scoped, tag = 'scoped memory for tpu_custom_call.1']
    #allocation7 [shape = 'u8[4096]{0}', space=vmem, size = 0x1000, scoped, tag = 'output window, operand 0, single buffered']
    %7 = vsyncpa [#allocation3], 0
    %8 = vsyncpa [#allocation6], 0
    %9 = vsyncpa [#allocation4], 0
    loop: start=0, step=1, limit=4
    $region2: #{tpu_custom_call.1} parent=1 // loop_pre_header
      _
    $region3: #{tpu_custom_call.1} parent=1 // loop_header
      %s11 = sphi 0, %s15
      %p12 = scmp.ge.s32.totalorder %s11, 4
      %s19 = sphi 0, %s19
      %s21 = sphi 0, %s19
      %s22 = sphi 0, %s21
      %s36 = sphi 0, %s22
      %s40 = sphi 0, %s40
      %s42 = sphi 0, %s40
      %s43 = sphi 0, %s42
      %s57 = sphi 0, %s43
      %s61 = sphi 0, %s61
      %s63 = sphi 0, %s61
      %s64 = sphi 0, %s63
      %s78 = sphi 0, %s64
    $region4: #{tpu_custom_call.1} parent=1 // loop_header_branch
      %14 = sbr.rel (%p12) target = $region8
    $region5: #{tpu_custom_call.1} parent=1 // loop_body
      %s16 = ssub.s32 %s11, 1
      %s17 = ssub.s32 %s11, 2
      %s18 = sadd.s32 %s11, 1
      %s20 = sadd.s32 %s19, 1
      %p23 = scmp.eq.s32.totalorder %s11, 1
      %p24 = scmp.ne.s32.totalorder %s19, %s21
      %p25 = scmp.eq.s32.totalorder %s11, 0
      %p26 = por %p24, %p25
      %p27 = scmp.ne.s32.totalorder %s19, %s21
      %p28 = scmp.eq.s32.totalorder %s16, 1
      %p29 = por %p27, %p28
      %p30 = scmp.ne.s32.totalorder %s21, %s22
      %p31 = scmp.eq.s32.totalorder %s16, 0
      %p32 = por %p30, %p31
      %p33 = scmp.ne.s32.totalorder %s21, %s22
      %p34 = scmp.eq.s32.totalorder %s17, 1
      %p35 = por %p33, %p34
      %p37 = scmp.ne.s32.totalorder %s22, %s36
      %p38 = scmp.eq.s32.totalorder %s17, 0
      %p39 = por %p37, %p38
      %s41 = sadd.s32 %s40, 1
      %p44 = scmp.eq.s32.totalorder %s11, 1
      %p45 = scmp.ne.s32.totalorder %s40, %s42
      %p46 = scmp.eq.s32.totalorder %s11, 0
      %p47 = por %p45, %p46
      %p48 = scmp.ne.s32.totalorder %s40, %s42
      %p49 = scmp.eq.s32.totalorder %s16, 1
      %p50 = por %p48, %p49
      %p51 = scmp.ne.s32.totalorder %s42, %s43
      %p52 = scmp.eq.s32.totalorder %s16, 0
      %p53 = por %p51, %p52
      %p54 = scmp.ne.s32.totalorder %s42, %s43
      %p55 = scmp.eq.s32.totalorder %s17, 1
      %p56 = por %p54, %p55
      %p58 = scmp.ne.s32.totalorder %s43, %s57
      %p59 = scmp.eq.s32.totalorder %s17, 0
      %p60 = por %p58, %p59
      %s62 = sadd.s32 %s61, 1
      %p65 = scmp.eq.s32.totalorder %s11, 1
      %p66 = scmp.ne.s32.totalorder %s61, %s63
      %p67 = scmp.eq.s32.totalorder %s11, 0
      %p68 = por %p66, %p67
      %p69 = scmp.ne.s32.totalorder %s61, %s63
      %p70 = scmp.eq.s32.totalorder %s16, 1
      %p71 = por %p69, %p70
      %p72 = scmp.ne.s32.totalorder %s63, %s64
      %p73 = scmp.eq.s32.totalorder %s16, 0
      %p74 = por %p72, %p73
      %p75 = scmp.ne.s32.totalorder %s63, %s64
      %p76 = scmp.eq.s32.totalorder %s17, 1
      %p77 = por %p75, %p76
      %p79 = scmp.ne.s32.totalorder %s64, %s78
      %p80 = scmp.eq.s32.totalorder %s17, 0
      %p81 = por %p79, %p80
      %p82 = scmp.le.s32.totalorder 1, %s11
      %p83 = scmp.lt.s32.totalorder %s11, 3
      %p84 = pnand %p82, %p83
      %p85 = pneg %p84
      // Predicated region
      $region9: #{tpu_custom_call.1} parent=5 // pred_check
        _
      $region10: #{tpu_custom_call.1} parent=5 // pred_check_branch
        %87 = sbr.rel (%p84) target = $region12
      $region11: #{tpu_custom_call.1} parent=5 // pred_region
        %s88 = ssub.s32 %s11, 1
        // Predicated region
        $region13: #{tpu_custom_call.1} parent=11 // pred_check
          %p89 = pneg %p32
        $region14: #{tpu_custom_call.1} parent=11 // pred_check_branch
          %91 = sbr.rel (%p89) target = $region16
        $region15: #{tpu_custom_call.1} parent=11 // pred_region
          %s93 = ssub.s32 128, 128
          %94 = vsyncadd [#allocation3], %s93
          %s96 = sshll.u32 [#allocation2], 4
          %s97 = int_to_ptr.vmem [resolvable:$true] %s96
          %99 = dma.hbm_to_vmem [thread:$0]  %s0, 128, %s97, [#allocation3]
        $region16: #{tpu_custom_call.1} parent=11 // pred_fallthru
          _
        // Predicated region
        $region17: #{tpu_custom_call.1} parent=11 // pred_check
          %p100 = pneg %p53
        $region18: #{tpu_custom_call.1} parent=11 // pred_check_branch
          %102 = sbr.rel (%p100) target = $region20
        $region19: #{tpu_custom_call.1} parent=11 // pred_region
          %s104 = ssub.s32 128, 128
          %105 = vsyncadd [#allocation6], %s104
          %s107 = sshll.u32 [#allocation5], 4
          %s108 = int_to_ptr.vmem [resolvable:$true] %s107
          %110 = dma.hbm_to_vmem [thread:$0]  %s1, 128, %s108, [#allocation6]
        $region20: #{tpu_custom_call.1} parent=11 // pred_fallthru
          _
      $region12: #{tpu_custom_call.1} parent=5 // pred_fallthru
        _
      %p111 = scmp.lt.s32.totalorder %s11, 2
      // Predicated region
      $region21: #{tpu_custom_call.1} parent=5 // pred_check
        %p112 = pneg %p111
      $region22: #{tpu_custom_call.1} parent=5 // pred_check_branch
        %114 = sbr.rel (%p112) target = $region24
      $region23: #{tpu_custom_call.1} parent=5 // pred_region
        _
      $region24: #{tpu_custom_call.1} parent=5 // pred_fallthru
        _
      %p115 = scmp.le.s32.totalorder 1, %s11
      %p116 = scmp.lt.s32.totalorder %s11, 3
      %p117 = pnand %p115, %p116
      %p118 = pneg %p117
      // Predicated region
      $region25: #{tpu_custom_call.1} parent=5 // pred_check
        _
      $region26: #{tpu_custom_call.1} parent=5 // pred_check_branch
        %120 = sbr.rel (%p117) target = $region28
      $region27: #{tpu_custom_call.1} parent=5 // pred_region
        %s121 = ssub.s32 %s11, 1
        // Predicated region
        $region29: #{tpu_custom_call.1} parent=27 // pred_check
          %p122 = pneg %p32
        $region30: #{tpu_custom_call.1} parent=27 // pred_check_branch
          %124 = sbr.rel (%p122) target = $region32
        $region31: #{tpu_custom_call.1} parent=27 // pred_region
          %125 = dma.done [#allocation3], 128
        $region32: #{tpu_custom_call.1} parent=27 // pred_fallthru
          _
        // Predicated region
        $region33: #{tpu_custom_call.1} parent=27 // pred_check
          %p126 = pneg %p53
        $region34: #{tpu_custom_call.1} parent=27 // pred_check_branch
          %128 = sbr.rel (%p126) target = $region36
        $region35: #{tpu_custom_call.1} parent=27 // pred_region
          %129 = dma.done [#allocation6], 128
        $region36: #{tpu_custom_call.1} parent=27 // pred_fallthru
          _
        %p130 = pneg %p32
        %p131 = pneg %p29
        %p132 = pneg %p53
        %p133 = pneg %p50
        %p134 = pneg %p74
        %p135 = pneg %p71
        %v136 = vld [vmem:[#allocation5] sm:$0xff]
        %v137 = vld [vmem:[#allocation2] sm:$0xff]
        %v138 = vadd.f32 %v136, %v137
        %139 = vst [vmem:[#allocation7] sm:$0xff] %v138
        // Predicated region
        $region37: #{tpu_custom_call.1} parent=27 // pred_check
          %p140 = pneg %p71
        $region38: #{tpu_custom_call.1} parent=27 // pred_check_branch
          %142 = sbr.rel (%p140) target = $region40
        $region39: #{tpu_custom_call.1} parent=27 // pred_region
          %s144 = ssub.s32 128, 128
          %145 = vsyncadd [#allocation4], %s144
          %s147 = sshll.u32 [#allocation7], 4
          %s148 = int_to_ptr.vmem [resolvable:$true] %s147
          %150 = dma.vmem_to_hbm [thread:$0]  %s148, 128, %s2, [#allocation4]
        $region40: #{tpu_custom_call.1} parent=27 // pred_fallthru
          _
        // Predicated region
        $region41: #{tpu_custom_call.1} parent=27 // pred_check
          %p151 = pneg %p71
        $region42: #{tpu_custom_call.1} parent=27 // pred_check_branch
          %153 = sbr.rel (%p151) target = $region44
        $region43: #{tpu_custom_call.1} parent=27 // pred_region
          %154 = dma.done [#allocation4], 128
        $region44: #{tpu_custom_call.1} parent=27 // pred_fallthru
          _
      $region28: #{tpu_custom_call.1} parent=5 // pred_fallthru
        _
      %p155 = scmp.le.s32.totalorder 2, %s11
      // Predicated region
      $region45: #{tpu_custom_call.1} parent=5 // pred_check
        %p156 = pneg %p155
      $region46: #{tpu_custom_call.1} parent=5 // pred_check_branch
        %158 = sbr.rel (%p156) target = $region48
      $region47: #{tpu_custom_call.1} parent=5 // pred_region
        %s159 = ssub.s32 %s11, 2
      $region48: #{tpu_custom_call.1} parent=5 // pred_fallthru
        _
    $region6: #{tpu_custom_call.1} parent=1 // loop_footer
      %s15 = sadd.s32 1, %s11
    $region7: #{tpu_custom_call.1} parent=1 // loop_footer_branch
      %10 = sbr.rel target = $region3
    $region8: #{tpu_custom_call.1} parent=1 // loop_exit
      _
    %160 = vsyncpa [#allocation3], 1
    %s161 = scalar_lea.sflag [#allocation3], 1
    %162 = vsyncpa %s161, 1
    %163 = vsyncpa [#allocation6], 1
    %164 = vsyncpa [#allocation4], 1
    %s165 = scalar_lea.sflag [#allocation4], 1
    %166 = vsyncpa %s165, 1

// kernel: tpu_custom_call.1
$region0: #{tpu_custom_call.1}
  #allocation0 [shape = 'u32[]', space=smem, size = 0x4, offset = 0x4, fixed_abs, tag = 'smem constant byte address 0x4 - core index']
  #allocation1 [shape = 'u32[144,128]{1,0:T(1,128)}', space=vmem, size = 0x12000, scoped, tag = 'internal scratch']
  %s0 = inlined_call_operand.vmem [shape: f32[2,64,128], index: 0, kind: input, shape index: {}]
  %s1 = inlined_call_operand.vmem [shape: f32[2,128,1], index: 1, kind: input, shape index: {}]
  %s2 = inlined_call_operand.vmem [shape: f32[64,1], index: 2, kind: input, shape index: {}]
  %s3 = inlined_call_operand.vmem [shape: f32[64,1], index: 3, kind: input, shape index: {}]
  %s4 = inlined_call_operand.vmem [shape: f32[64,32], index: 4, kind: input, shape index: {}]
  %s5 = inlined_call_operand.vmem [shape: f32[32,64], index: 5, kind: input, shape index: {}]
  %s6 = inlined_call_operand.vmem [shape: bf16[192,64], index: 6, kind: input, shape index: {}]
  %s7 = inlined_call_operand.vmem [shape: f32[192,1], index: 7, kind: input, shape index: {}]
  %s8 = inlined_call_operand.vmem [shape: bf16[64,64], index: 8, kind: input, shape index: {}]
  %s9 = inlined_call_operand.vmem [shape: f32[64,1], index: 9, kind: input, shape index: {}]
  %s10 = inlined_call_operand.hbm [shape: f32[2,64,128], index: 10, kind: output, shape index: {}]
  %s11 = sld [smem:[#allocation0]]
  $region73: #{tpu_custom_call.1} parent=0
    _
  %s13 = ssub.s32 1, %s11
  %s14 = scalar_select 0, %s13, %s11
  $region1: #{tpu_custom_call.1} parent=0
    #allocation2 [shape = 'u8[65536]{0}', space=vmem, size = 0x10000, scoped, tag = 'output window, operand 0']
    #allocation3 [shape = 's32[2]{0}', space=sflag, size = 0x8, scoped, tag = 'scoped memory for tpu_custom_call.1']
    %15 = vsyncpa [#allocation3], 0
    %s16 = scalar_lea.sflag [#allocation3], 1
    %17 = vsyncpa %s16, 0
    loop: start=0, step=1, limit=4
    $region2: #{tpu_custom_call.1} parent=1 // loop_pre_header
      _
    $region3: #{tpu_custom_call.1} parent=1 // loop_header
      %s19 = sphi 0, %s23
      %p20 = scmp.ge.s32.totalorder %s19, 4
      %s29 = sphi 0, %s31
      %s32 = sphi 0, %s29
      %s33 = sphi 0, %s32
      %s49 = sphi 0, %s33
      %s55 = sphi 0, %s57
      %s58 = sphi 0, %s55
      %s59 = sphi 0, %s58
      %s75 = sphi 0, %s59
      %s79 = sphi 0, %s79
      %s81 = sphi 0, %s79
      %s82 = sphi 0, %s81
      %s96 = sphi 0, %s82
      %s100 = sphi 0, %s100
      %s102 = sphi 0, %s100
      %s103 = sphi 0, %s102
      %s117 = sphi 0, %s103
      %s121 = sphi 0, %s121
      %s123 = sphi 0, %s121
      %s124 = sphi 0, %s123
      %s138 = sphi 0, %s124
      %s142 = sphi 0, %s142
      %s144 = sphi 0, %s142
      %s145 = sphi 0, %s144
      %s159 = sphi 0, %s145
      %s163 = sphi 0, %s163
      %s165 = sphi 0, %s163
      %s166 = sphi 0, %s165
      %s180 = sphi 0, %s166
      %s184 = sphi 0, %s184
      %s186 = sphi 0, %s184
      %s187 = sphi 0, %s186
      %s201 = sphi 0, %s187
      %s205 = sphi 0, %s205
      %s207 = sphi 0, %s205
      %s208 = sphi 0, %s207
      %s222 = sphi 0, %s208
      %s226 = sphi 0, %s226
      %s228 = sphi 0, %s226
      %s229 = sphi 0, %s228
      %s243 = sphi 0, %s229
      %s249 = sphi 0, %s251
      %s252 = sphi 0, %s249
      %s253 = sphi 0, %s252
      %s269 = sphi 0, %s253
    $region4: #{tpu_custom_call.1} parent=1 // loop_header_branch
      %22 = sbr.rel (%p20) target = $region8
    $region5: #{tpu_custom_call.1} parent=1 // loop_body
      %s24 = ssub.s32 %s19, 1
      %s25 = ssub.s32 %s19, 2
      %s26 = sadd.s32 %s19, 1
      %s27 = ssub.s32 %s19, %s26
      %p28 = scmp.eq.s32.totalorder %s27, 0
      %s30 = sadd.s32 %s29, 1
      %s31 = scalar_select %p28, %s29, %s30
      %p34 = pneg %p28
      %p35 = scmp.eq.s32.totalorder %s19, 1
      %p36 = por %p34, %p35
      %p37 = scmp.ne.s32.totalorder %s29, %s32
      %p38 = scmp.eq.s32.totalorder %s19, 0
      %p39 = por %p37, %p38
      %p40 = scmp.ne.s32.totalorder %s29, %s32
      %p41 = scmp.eq.s32.totalorder %s24, 1
      %p42 = por %p40, %p41
      %p43 = scmp.ne.s32.totalorder %s32, %s33
      %p44 = scmp.eq.s32.totalorder %s24, 0
      %p45 = por %p43, %p44
      %p46 = scmp.ne.s32.totalorder %s32, %s33
      %p47 = scmp.eq.s32.totalorder %s25, 1
      %p48 = por %p46, %p47
      %p50 = scmp.ne.s32.totalorder %s33, %s49
      %p51 = scmp.eq.s32.totalorder %s25, 0
      %p52 = por %p50, %p51
      %s53 = ssub.s32 %s19, %s26
      %p54 = scmp.eq.s32.totalorder %s53, 0
      %s56 = sadd.s32 %s55, 1
      %s57 = scalar_select %p54, %s55, %s56
      %p60 = pneg %p54
      %p61 = scmp.eq.s32.totalorder %s19, 1
      %p62 = por %p60, %p61
      %p63 = scmp.ne.s32.totalorder %s55, %s58
      %p64 = scmp.eq.s32.totalorder %s19, 0
      %p65 = por %p63, %p64
      %p66 = scmp.ne.s32.totalorder %s55, %s58
      %p67 = scmp.eq.s32.totalorder %s24, 1
      %p68 = por %p66, %p67
      %p69 = scmp.ne.s32.totalorder %s58, %s59
      %p70 = scmp.eq.s32.totalorder %s24, 0
      %p71 = por %p69, %p70
      %p72 = scmp.ne.s32.totalorder %s58, %s59
      %p73 = scmp.eq.s32.totalorder %s25, 1
      %p74 = por %p72, %p73
      %p76 = scmp.ne.s32.totalorder %s59, %s75
      %p77 = scmp.eq.s32.totalorder %s25, 0
      %p78 = por %p76, %p77
      %s80 = sadd.s32 %s79, 1
      %p83 = scmp.eq.s32.totalorder %s19, 1
      %p84 = scmp.ne.s32.totalorder %s79, %s81
      %p85 = scmp.eq.s32.totalorder %s19, 0
      %p86 = por %p84, %p85
      %p87 = scmp.ne.s32.totalorder %s79, %s81
      %p88 = scmp.eq.s32.totalorder %s24, 1
      %p89 = por %p87, %p88
      %p90 = scmp.ne.s32.totalorder %s81, %s82
      %p91 = scmp.eq.s32.totalorder %s24, 0
      %p92 = por %p90, %p91
      %p93 = scmp.ne.s32.totalorder %s81, %s82
      %p94 = scmp.eq.s32.totalorder %s25, 1
      %p95 = por %p93, %p94
      %p97 = scmp.ne.s32.totalorder %s82, %s96
      %p98 = scmp.eq.s32.totalorder %s25, 0
      %p99 = por %p97, %p98
      %s101 = sadd.s32 %s100, 1
      %p104 = scmp.eq.s32.totalorder %s19, 1
      %p105 = scmp.ne.s32.totalorder %s100, %s102
      %p106 = scmp.eq.s32.totalorder %s19, 0
      %p107 = por %p105, %p106
      %p108 = scmp.ne.s32.totalorder %s100, %s102
      %p109 = scmp.eq.s32.totalorder %s24, 1
      %p110 = por %p108, %p109
      %p111 = scmp.ne.s32.totalorder %s102, %s103
      %p112 = scmp.eq.s32.totalorder %s24, 0
      %p113 = por %p111, %p112
      %p114 = scmp.ne.s32.totalorder %s102, %s103
      %p115 = scmp.eq.s32.totalorder %s25, 1
      %p116 = por %p114, %p115
      %p118 = scmp.ne.s32.totalorder %s103, %s117
      %p119 = scmp.eq.s32.totalorder %s25, 0
      %p120 = por %p118, %p119
      %s122 = sadd.s32 %s121, 1
      %p125 = scmp.eq.s32.totalorder %s19, 1
      %p126 = scmp.ne.s32.totalorder %s121, %s123
      %p127 = scmp.eq.s32.totalorder %s19, 0
      %p128 = por %p126, %p127
      %p129 = scmp.ne.s32.totalorder %s121, %s123
      %p130 = scmp.eq.s32.totalorder %s24, 1
      %p131 = por %p129, %p130
      %p132 = scmp.ne.s32.totalorder %s123, %s124
      %p133 = scmp.eq.s32.totalorder %s24, 0
      %p134 = por %p132, %p133
      %p135 = scmp.ne.s32.totalorder %s123, %s124
      %p136 = scmp.eq.s32.totalorder %s25, 1
      %p137 = por %p135, %p136
      %p139 = scmp.ne.s32.totalorder %s124, %s138
      %p140 = scmp.eq.s32.totalorder %s25, 0
      %p141 = por %p139, %p140
      %s143 = sadd.s32 %s142, 1
      %p146 = scmp.eq.s32.totalorder %s19, 1
      %p147 = scmp.ne.s32.totalorder %s142, %s144
      %p148 = scmp.eq.s32.totalorder %s19, 0
      %p149 = por %p147, %p148
      %p150 = scmp.ne.s32.totalorder %s142, %s144
      %p151 = scmp.eq.s32.totalorder %s24, 1
      %p152 = por %p150, %p151
      %p153 = scmp.ne.s32.totalorder %s144, %s145
      %p154 = scmp.eq.s32.totalorder %s24, 0
      %p155 = por %p153, %p154
      %p156 = scmp.ne.s32.totalorder %s144, %s145
      %p157 = scmp.eq.s32.totalorder %s25, 1
      %p158 = por %p156, %p157
      %p160 = scmp.ne.s32.totalorder %s145, %s159
      %p161 = scmp.eq.s32.totalorder %s25, 0
      %p162 = por %p160, %p161
      %s164 = sadd.s32 %s163, 1
      %p167 = scmp.eq.s32.totalorder %s19, 1
      %p168 = scmp.ne.s32.totalorder %s163, %s165
      %p169 = scmp.eq.s32.totalorder %s19, 0
      %p170 = por %p168, %p169
      %p171 = scmp.ne.s32.totalorder %s163, %s165
      %p172 = scmp.eq.s32.totalorder %s24, 1
      %p173 = por %p171, %p172
      %p174 = scmp.ne.s32.totalorder %s165, %s166
      %p175 = scmp.eq.s32.totalorder %s24, 0
      %p176 = por %p174, %p175
      %p177 = scmp.ne.s32.totalorder %s165, %s166
      %p178 = scmp.eq.s32.totalorder %s25, 1
      %p179 = por %p177, %p178
      %p181 = scmp.ne.s32.totalorder %s166, %s180
      %p182 = scmp.eq.s32.totalorder %s25, 0
      %p183 = por %p181, %p182
      %s185 = sadd.s32 %s184, 1
      %p188 = scmp.eq.s32.totalorder %s19, 1
      %p189 = scmp.ne.s32.totalorder %s184, %s186
      %p190 = scmp.eq.s32.totalorder %s19, 0
      %p191 = por %p189, %p190
      %p192 = scmp.ne.s32.totalorder %s184, %s186
      %p193 = scmp.eq.s32.totalorder %s24, 1
      %p194 = por %p192, %p193
      %p195 = scmp.ne.s32.totalorder %s186, %s187
      %p196 = scmp.eq.s32.totalorder %s24, 0
      %p197 = por %p195, %p196
      %p198 = scmp.ne.s32.totalorder %s186, %s187
      %p199 = scmp.eq.s32.totalorder %s25, 1
      %p200 = por %p198, %p199
      %p202 = scmp.ne.s32.totalorder %s187, %s201
      %p203 = scmp.eq.s32.totalorder %s25, 0
      %p204 = por %p202, %p203
      %s206 = sadd.s32 %s205, 1
      %p209 = scmp.eq.s32.totalorder %s19, 1
      %p210 = scmp.ne.s32.totalorder %s205, %s207
      %p211 = scmp.eq.s32.totalorder %s19, 0
      %p212 = por %p210, %p211
      %p213 = scmp.ne.s32.totalorder %s205, %s207
      %p214 = scmp.eq.s32.totalorder %s24, 1
      %p215 = por %p213, %p214
      %p216 = scmp.ne.s32.totalorder %s207, %s208
      %p217 = scmp.eq.s32.totalorder %s24, 0
      %p218 = por %p216, %p217
      %p219 = scmp.ne.s32.totalorder %s207, %s208
      %p220 = scmp.eq.s32.totalorder %s25, 1
      %p221 = por %p219, %p220
      %p223 = scmp.ne.s32.totalorder %s208, %s222
      %p224 = scmp.eq.s32.totalorder %s25, 0
      %p225 = por %p223, %p224
      %s227 = sadd.s32 %s226, 1
      %p230 = scmp.eq.s32.totalorder %s19, 1
      %p231 = scmp.ne.s32.totalorder %s226, %s228
      %p232 = scmp.eq.s32.totalorder %s19, 0
      %p233 = por %p231, %p232
      %p234 = scmp.ne.s32.totalorder %s226, %s228
      %p235 = scmp.eq.s32.totalorder %s24, 1
      %p236 = por %p234, %p235
      %p237 = scmp.ne.s32.totalorder %s228, %s229
      %p238 = scmp.eq.s32.totalorder %s24, 0
      %p239 = por %p237, %p238
      %p240 = scmp.ne.s32.totalorder %s228, %s229
      %p241 = scmp.eq.s32.totalorder %s25, 1
      %p242 = por %p240, %p241
      %p244 = scmp.ne.s32.totalorder %s229, %s243
      %p245 = scmp.eq.s32.totalorder %s25, 0
      %p246 = por %p244, %p245
      %s247 = ssub.s32 %s19, %s26
      %p248 = scmp.eq.s32.totalorder %s247, 0
      %s250 = sadd.s32 %s249, 1
      %s251 = scalar_select %p248, %s249, %s250
      %p254 = pneg %p248
      %p255 = scmp.eq.s32.totalorder %s19, 1
      %p256 = por %p254, %p255
      %p257 = scmp.ne.s32.totalorder %s249, %s252
      %p258 = scmp.eq.s32.totalorder %s19, 0
      %p259 = por %p257, %p258
      %p260 = scmp.ne.s32.totalorder %s249, %s252
      %p261 = scmp.eq.s32.totalorder %s24, 1
      %p262 = por %p260, %p261
      %p263 = scmp.ne.s32.totalorder %s252, %s253
      %p264 = scmp.eq.s32.totalorder %s24, 0
      %p265 = por %p263, %p264
      %p266 = scmp.ne.s32.totalorder %s252, %s253
      %p267 = scmp.eq.s32.totalorder %s25, 1
      %p268 = por %p266, %p267
      %p270 = scmp.ne.s32.totalorder %s253, %s269
      %p271 = scmp.eq.s32.totalorder %s25, 0
      %p272 = por %p270, %p271
      %p273 = scmp.le.s32.totalorder 1, %s19
      %p274 = scmp.lt.s32.totalorder %s19, 3
      %p275 = pnand %p273, %p274
      %p276 = pneg %p275
      // Predicated region
      $region9: #{tpu_custom_call.1} parent=5 // pred_check
        _
      $region10: #{tpu_custom_call.1} parent=5 // pred_check_branch
        %278 = sbr.rel (%p275) target = $region12
      $region11: #{tpu_custom_call.1} parent=5 // pred_region
        %s279 = ssub.s32 %s19, 1
        // Predicated region
        $region13: #{tpu_custom_call.1} parent=11 // pred_check
          %p280 = pneg %p92
        $region14: #{tpu_custom_call.1} parent=11 // pred_check_branch
          %282 = sbr.rel (%p280) target = $region16
        $region15: #{tpu_custom_call.1} parent=11 // pred_region
          _
        $region16: #{tpu_custom_call.1} parent=11 // pred_fallthru
          _
        // Predicated region
        $region17: #{tpu_custom_call.1} parent=11 // pred_check
          %p283 = pneg %p113
        $region18: #{tpu_custom_call.1} parent=11 // pred_check_branch
          %285 = sbr.rel (%p283) target = $region20
        $region19: #{tpu_custom_call.1} parent=11 // pred_region
          _
        $region20: #{tpu_custom_call.1} parent=11 // pred_fallthru
          _
        // Predicated region
        $region21: #{tpu_custom_call.1} parent=11 // pred_check
          %p286 = pneg %p134
        $region22: #{tpu_custom_call.1} parent=11 // pred_check_branch
          %288 = sbr.rel (%p286) target = $region24
        $region23: #{tpu_custom_call.1} parent=11 // pred_region
          _
        $region24: #{tpu_custom_call.1} parent=11 // pred_fallthru
          _
        // Predicated region
        $region25: #{tpu_custom_call.1} parent=11 // pred_check
          %p289 = pneg %p155
        $region26: #{tpu_custom_call.1} parent=11 // pred_check_branch
          %291 = sbr.rel (%p289) target = $region28
        $region27: #{tpu_custom_call.1} parent=11 // pred_region
          _
        $region28: #{tpu_custom_call.1} parent=11 // pred_fallthru
          _
        // Predicated region
        $region29: #{tpu_custom_call.1} parent=11 // pred_check
          %p292 = pneg %p176
        $region30: #{tpu_custom_call.1} parent=11 // pred_check_branch
          %294 = sbr.rel (%p292) target = $region32
        $region31: #{tpu_custom_call.1} parent=11 // pred_region
          _
        $region32: #{tpu_custom_call.1} parent=11 // pred_fallthru
          _
        // Predicated region
        $region33: #{tpu_custom_call.1} parent=11 // pred_check
          %p295 = pneg %p197
        $region34: #{tpu_custom_call.1} parent=11 // pred_check_branch
          %297 = sbr.rel (%p295) target = $region36
        $region35: #{tpu_custom_call.1} parent=11 // pred_region
          _
        $region36: #{tpu_custom_call.1} parent=11 // pred_fallthru
          _
        // Predicated region
        $region37: #{tpu_custom_call.1} parent=11 // pred_check
          %p298 = pneg %p218
        $region38: #{tpu_custom_call.1} parent=11 // pred_check_branch
          %300 = sbr.rel (%p298) target = $region40
        $region39: #{tpu_custom_call.1} parent=11 // pred_region
          _
        $region40: #{tpu_custom_call.1} parent=11 // pred_fallthru
          _
        // Predicated region
        $region41: #{tpu_custom_call.1} parent=11 // pred_check
          %p301 = pneg %p239
        $region42: #{tpu_custom_call.1} parent=11 // pred_check_branch
          %303 = sbr.rel (%p301) target = $region44
        $region43: #{tpu_custom_call.1} parent=11 // pred_region
          _
        $region44: #{tpu_custom_call.1} parent=11 // pred_fallthru
          _
      $region12: #{tpu_custom_call.1} parent=5 // pred_fallthru
        _
      %p304 = scmp.lt.s32.totalorder %s19, 2
      // Predicated region
      $region45: #{tpu_custom_call.1} parent=5 // pred_check
        %p305 = pneg %p304
      $region46: #{tpu_custom_call.1} parent=5 // pred_check_branch
        %307 = sbr.rel (%p305) target = $region48
      $region47: #{tpu_custom_call.1} parent=5 // pred_region
        // Predicated region
        $region49: #{tpu_custom_call.1} parent=47 // pred_check
          %p308 = pneg %p39
        $region50: #{tpu_custom_call.1} parent=47 // pred_check_branch
          %310 = sbr.rel (%p308) target = $region52
        $region51: #{tpu_custom_call.1} parent=47 // pred_region
          %p311 = scmp.lt.s32.totalorder %s19, 1
          %s312 = scalar_select %p311, %s19, 1
          %s313 = smul.addr %s312, 8
          %s314 = smul.addr %s313, 8
          %s315 = scalar_lea.vmem %s0, %s314
        $region52: #{tpu_custom_call.1} parent=47 // pred_fallthru
          _
        // Predicated region
        $region53: #{tpu_custom_call.1} parent=47 // pred_check
          %p316 = pneg %p65
        $region54: #{tpu_custom_call.1} parent=47 // pred_check_branch
          %318 = sbr.rel (%p316) target = $region56
        $region55: #{tpu_custom_call.1} parent=47 // pred_region
          %p319 = scmp.lt.s32.totalorder %s19, 1
          %s320 = scalar_select %p319, %s19, 1
          %s321 = smul.addr %s320, 16
          %s322 = smul.addr %s321, 8
          %s323 = scalar_lea.vmem %s1, %s322
        $region56: #{tpu_custom_call.1} parent=47 // pred_fallthru
          _
      $region48: #{tpu_custom_call.1} parent=5 // pred_fallthru
        _
      %p324 = scmp.le.s32.totalorder 1, %s19
      %p325 = scmp.lt.s32.totalorder %s19, 3
      %p326 = pnand %p324, %p325
      %p327 = pneg %p326
      // Predicated region
      $region57: #{tpu_custom_call.1} parent=5 // pred_check
        _
      $region58: #{tpu_custom_call.1} parent=5 // pred_check_branch
        %329 = sbr.rel (%p326) target = $region60
      $region59: #{tpu_custom_call.1} parent=5 // pred_region
        %s330 = ssub.s32 %s19, 1
        %p331 = scmp.lt.s32.totalorder %s24, 1
        %s332 = scalar_select %p331, %s24, 1
        %s333 = smul.addr %s332, 8
        %s334 = smul.addr %s333, 8
        %s335 = scalar_lea.vmem %s0, %s334
        %p336 = pneg %p45
        %p337 = pneg %p42
        %p338 = scmp.lt.s32.totalorder %s24, 1
        %s339 = scalar_select %p338, %s24, 1
        %s340 = smul.addr %s339, 16
        %s341 = smul.addr %s340, 8
        %s342 = scalar_lea.vmem %s1, %s341
        %p343 = pneg %p71
        %p344 = pneg %p68
        %p345 = pneg %p92
        %p346 = pneg %p89
        %p347 = pneg %p113
        %p348 = pneg %p110
        %p349 = pneg %p134
        %p350 = pneg %p131
        %p351 = pneg %p155
        %p352 = pneg %p152
        %p353 = pneg %p176
        %p354 = pneg %p173
        %p355 = pneg %p197
        %p356 = pneg %p194
        %p357 = pneg %p218
        %p358 = pneg %p215
        %p359 = pneg %p239
        %p360 = pneg %p236
        %p361 = pneg %p265
        %p362 = pneg %p262
        %s363 = sand.u32 %s252, 1
        %s364 = scalar_lea.sflag [#allocation3], %s363
        %s365 = sand.u32 %s252, 1
        %s366 = smul.addr %s365, 64
        %s367 = scalar_lea.vmem [#allocation2], %s366
        %p368 = scmp.lt.s32.totalorder %s24, 1
        %s369 = scalar_select %p368, %s24, 1
        %s370 = smul.addr %s369, 8
        %s371 = smul.addr %s370, 8
        %s372 = scalar_lea.vmem %s0, %s371
        %p373 = scmp.lt.s32.totalorder %s24, 1
        %s374 = scalar_select %p373, %s24, 1
        %s375 = smul.addr %s374, 16
        %s376 = smul.addr %s375, 8
        %s377 = scalar_lea.vmem %s1, %s376
        %v379 = vld [vmem:[%s372] sm:$0xff]
        %v380 = vld [vmem:[%s372 + $0x8] sm:$0xff]
        %v381 = vld [vmem:[%s372 + $0x10] sm:$0xff]
        %v382 = vld [vmem:[%s372 + $0x18] sm:$0xff]
        %v383 = vld [vmem:[%s372 + $0x20] sm:$0xff]
        %v384 = vld [vmem:[%s372 + $0x28] sm:$0xff]
        %v385 = vld [vmem:[%s372 + $0x30] sm:$0xff]
        %v386 = vld [vmem:[%s372 + $0x38] sm:$0xff]
        %v387 = vld [vmem:[%s377] sm:$0xff]
        %v388 = vld [vmem:[%s377 + $0x8] sm:$0xff]
        %v389 = vld [vmem:[%s377 + $0x10] sm:$0xff]
        %v390 = vld [vmem:[%s377 + $0x18] sm:$0xff]
        %v391 = vld [vmem:[%s377 + $0x20] sm:$0xff]
        %v392 = vld [vmem:[%s377 + $0x28] sm:$0xff]
        %v393 = vld [vmem:[%s377 + $0x30] sm:$0xff]
        %v394 = vld [vmem:[%s377 + $0x38] sm:$0xff]
        %v395 = vld [vmem:[%s377 + $0x40] sm:$0xff]
        %v396 = vld [vmem:[%s377 + $0x48] sm:$0xff]
        %v397 = vld [vmem:[%s377 + $0x50] sm:$0xff]
        %v398 = vld [vmem:[%s377 + $0x58] sm:$0xff]
        %v399 = vld [vmem:[%s377 + $0x60] sm:$0xff]
        %v400 = vld [vmem:[%s377 + $0x68] sm:$0xff]
        %v401 = vld [vmem:[%s377 + $0x70] sm:$0xff]
        %v402 = vld [vmem:[%s377 + $0x78] sm:$0xff]
        %403 = vadd.xlane.f32.xlu0 %v379
        %v404 = vpop.xlane.xlu0 %403
        %405 = vadd.xlane.f32.xlu0 %v380
        %v406 = vpop.xlane.xlu0 %405
        %407 = vadd.xlane.f32.xlu0 %v381
        %v408 = vpop.xlane.xlu0 %407
        %409 = vadd.xlane.f32.xlu0 %v382
        %v410 = vpop.xlane.xlu0 %409
        %411 = vadd.xlane.f32.xlu0 %v383
        %v412 = vpop.xlane.xlu0 %411
        %413 = vadd.xlane.f32.xlu0 %v384
        %v414 = vpop.xlane.xlu0 %413
        %415 = vadd.xlane.f32.xlu0 %v385
        %v416 = vpop.xlane.xlu0 %415
        %417 = vadd.xlane.f32.xlu0 %v386
        %v418 = vpop.xlane.xlu0 %417
        %v419 = vld [vmem:[%s4] sm:$0xff]
        %v420 = vld [vmem:[%s4 + $0x8] sm:$0xff]
        %v421 = vld [vmem:[%s4 + $0x10] sm:$0xff]
        %v422 = vld [vmem:[%s4 + $0x18] sm:$0xff]
        %v423 = vld [vmem:[%s4 + $0x20] sm:$0xff]
        %v424 = vld [vmem:[%s4 + $0x28] sm:$0xff]
        %v425 = vld [vmem:[%s4 + $0x30] sm:$0xff]
        %v426 = vld [vmem:[%s4 + $0x38] sm:$0xff]
        %v427 = vld [vmem:[%s5] sm:$0xff]
        %v428 = vld [vmem:[%s5 + $0x8] sm:$0xff]
        %v429 = vld [vmem:[%s5 + $0x10] sm:$0xff]
        %v430 = vld [vmem:[%s5 + $0x18] sm:$0xff]
        %vm431 = vcmask 523264
        %v433 = vsel %vm431, %v427, 0
        %v436 = vsel %vm431, %v428, 0
        %v439 = vsel %vm431, %v429, 0
        %v442 = vsel %vm431, %v430, 0
        %444 = vmatprep.subr.mxu0 0.0
        %445 = vmatpush1.msra.mxu0 0.0
        %446 = vmatprep.subr.mxu0 0.0
        %447 = vmatpush1.msra.mxu0 0.0
        %448 = vmatprep.subr.mxu0 0.0
        %449 = vmatpush1.msra.mxu0 0.0
        %450 = vmatprep.subr.mxu0 0.0
        %451 = vmatpush1.msra.mxu0 0.0
        %452 = vmatprep.subr.mxu0 0.0
        %453 = vmatpush1.msra.mxu0 0.0
        %454 = vmatprep.subr.mxu0 0.0
        %455 = vmatpush1.msra.mxu0 0.0
        %456 = vmatprep.subr.mxu0 0.0
        %457 = vmatpush1.msra.mxu0 0.0
        %458 = vmatprep.subr.mxu0 0.0
        %459 = vmatpush1.msra.mxu0 0.0
        %460 = vmatprep.subr.mxu0 0.0
        %461 = vmatpush1.msra.mxu0 %v418
        %462 = vmatprep.subr.mxu0 0.0
        %463 = vmatpush1.msra.mxu0 %v416
        %464 = vmatprep.subr.mxu0 0.0
        %465 = vmatpush1.msra.mxu0 %v414
        %466 = vmatprep.subr.mxu0 0.0
        %467 = vmatpush1.msra.mxu0 %v412
        %468 = vmatprep.subr.mxu0 0.0
        %469 = vmatpush1.msra.mxu0 %v410
        %470 = vmatprep.subr.mxu0 0.0
        %471 = vmatpush1.msra.mxu0 %v408
        %472 = vmatprep.subr.mxu0 0.0
        %473 = vmatpush1.msra.mxu0 %v406
        %474 = vmatprep.subr.mxu0 0.0
        %475 = vmatpush1.msra.mxu0 %v404
        %476 = vmatprep.subr.mxu0 0.0
        %477 = vmatpush2.msra.mxu0 0.0
        %478 = vmatprep.subr.mxu0 0.0
        %479 = vmatpush2.msra.mxu0 0.0
        %480 = vmatprep.subr.mxu0 0.0
        %481 = vmatpush2.msra.mxu0 0.0
        %482 = vmatprep.subr.mxu0 0.0
        %483 = vmatpush2.msra.mxu0 0.0
        %484 = vmatprep.subr.mxu0 0.0
        %485 = vmatpush2.msra.mxu0 0.0
        %486 = vmatprep.subr.mxu0 0.0
        %487 = vmatpush2.msra.mxu0 0.0
        %488 = vmatprep.subr.mxu0 0.0
        %489 = vmatpush2.msra.mxu0 0.0
        %490 = vmatprep.subr.mxu0 0.0
        %491 = vmatpush2.msra.mxu0 0.0
        %492 = vmatprep.subr.mxu0 0.0
        %493 = vmatpush2.msra.mxu0 0.0
        %494 = vmatprep.subr.mxu0 0.0
        %495 = vmatpush2.msra.mxu0 0.0
        %496 = vmatprep.subr.mxu0 0.0
        %497 = vmatpush2.msra.mxu0 0.0
        %498 = vmatprep.subr.mxu0 0.0
        %499 = vmatpush2.msra.mxu0 0.0
        %500 = vmatprep.subr.mxu0 0.0
        %501 = vmatpush2.msra.mxu0 0.0
        %502 = vmatprep.subr.mxu0 0.0
        %503 = vmatpush2.msra.mxu0 0.0
        %504 = vmatprep.subr.mxu0 0.0
        %505 = vmatpush2.msra.mxu0 0.0
        %506 = vmatprep.subr.mxu0 0.0
        %507 = vmatpush2.msra.mxu0 0.0
        %508 = vmatprep.mubr.f32.mxu0 0.0
        %509 = vmatmul.mubr.f32.gmra.mxu0 %v433
        %v510 = vpop.f32.mrf.mxu0
        %v511 = vadd.f32 0.0, %v510
        %v512 = vpop.f32.mrf.mxu0
        %513 = vmatprep.mubr.f32.mxu0 0.0
        %514 = vmatmul.mubr.f32.gmra.mxu0 %v436
        %v515 = vpop.f32.mrf.mxu0
        %v516 = vadd.f32 0.0, %v515
        %v517 = vpop.f32.mrf.mxu0
        %518 = vmatprep.mubr.f32.mxu0 0.0
        %519 = vmatmul.mubr.f32.gmra.mxu0 %v439
        %v520 = vpop.f32.mrf.mxu0
        %v521 = vadd.f32 0.0, %v520
        %v522 = vpop.f32.mrf.mxu0
        %523 = vmatprep.mubr.f32.mxu0 0.0
        %524 = vmatmul.mubr.f32.gmra.mxu0 %v442
        %v525 = vpop.f32.mrf.mxu0
        %v526 = vadd.f32 0.0, %v525
        %v527 = vpop.f32.mrf.mxu0
        %528 = vdwg.mxu0
        %v529 = vmul.f32 %v511, 0.00390625
        %v530 = vmul.f32 %v516, 0.00390625
        %v531 = vmul.f32 %v521, 0.00390625
        %v532 = vmul.f32 %v526, 0.00390625
        %vm533 = vcmask 261120
        %v535 = vsel %vm533, %v419, 0
        %v538 = vsel %vm533, %v420, 0
        %v541 = vsel %vm533, %v421, 0
        %v544 = vsel %vm533, %v422, 0
        %v547 = vsel %vm533, %v423, 0
        %v550 = vsel %vm533, %v424, 0
        %v553 = vsel %vm533, %v425, 0
        %v556 = vsel %vm533, %v426, 0
        %558 = vmatprep.subr.mxu0 0.0
        %559 = vmatpush1.msra.mxu0 0.0
        %560 = vmatprep.subr.mxu0 0.0
        %561 = vmatpush1.msra.mxu0 0.0
        %562 = vmatprep.subr.mxu0 0.0
        %563 = vmatpush1.msra.mxu0 0.0
        %564 = vmatprep.subr.mxu0 0.0
        %565 = vmatpush1.msra.mxu0 0.0
        %566 = vmatprep.subr.mxu0 0.0
        %567 = vmatpush1.msra.mxu0 0.0
        %568 = vmatprep.subr.mxu0 0.0
        %569 = vmatpush1.msra.mxu0 0.0
        %570 = vmatprep.subr.mxu0 0.0
        %571 = vmatpush1.msra.mxu0 0.0
        %572 = vmatprep.subr.mxu0 0.0
        %573 = vmatpush1.msra.mxu0 0.0
        %574 = vmatprep.subr.mxu0 0.0
        %575 = vmatpush1.msra.mxu0 0.0
        %576 = vmatprep.subr.mxu0 0.0
        %577 = vmatpush1.msra.mxu0 0.0
        %578 = vmatprep.subr.mxu0 0.0
        %579 = vmatpush1.msra.mxu0 0.0
        %580 = vmatprep.subr.mxu0 0.0
        %581 = vmatpush1.msra.mxu0 0.0
        %582 = vmatprep.subr.mxu0 0.0
        %583 = vmatpush1.msra.mxu0 %v532
        %584 = vmatprep.subr.mxu0 0.0
        %585 = vmatpush1.msra.mxu0 %v531
        %586 = vmatprep.subr.mxu0 0.0
        %587 = vmatpush1.msra.mxu0 %v530
        %588 = vmatprep.subr.mxu0 0.0
        %589 = vmatpush1.msra.mxu0 %v529
        %590 = vmatprep.subr.mxu0 0.0
        %591 = vmatpush2.msra.mxu0 0.0
        %592 = vmatprep.subr.mxu0 0.0
        %593 = vmatpush2.msra.mxu0 0.0
        %594 = vmatprep.subr.mxu0 0.0
        %595 = vmatpush2.msra.mxu0 0.0
        %596 = vmatprep.subr.mxu0 0.0
        %597 = vmatpush2.msra.mxu0 0.0
        %598 = vmatprep.subr.mxu0 0.0
        %599 = vmatpush2.msra.mxu0 0.0
        %600 = vmatprep.subr.mxu0 0.0
        %601 = vmatpush2.msra.mxu0 0.0
        %602 = vmatprep.subr.mxu0 0.0
        %603 = vmatpush2.msra.mxu0 0.0
        %604 = vmatprep.subr.mxu0 0.0
        %605 = vmatpush2.msra.mxu0 0.0
        %606 = vmatprep.subr.mxu0 0.0
        %607 = vmatpush2.msra.mxu0 0.0
        %608 = vmatprep.subr.mxu0 0.0
        %609 = vmatpush2.msra.mxu0 0.0
        %610 = vmatprep.subr.mxu0 0.0
        %611 = vmatpush2.msra.mxu0 0.0
        %612 = vmatprep.subr.mxu0 0.0
        %613 = vmatpush2.msra.mxu0 0.0
        %614 = vmatprep.subr.mxu0 0.0
        %615 = vmatpush2.msra.mxu0 0.0
        %616 = vmatprep.subr.mxu0 0.0
        %617 = vmatpush2.msra.mxu0 0.0
        %618 = vmatprep.subr.mxu0 0.0
        %619 = vmatpush2.msra.mxu0 0.0
        %620 = vmatprep.subr.mxu0 0.0
        %621 = vmatpush2.msra.mxu0 0.0
        %622 = vmatprep.mubr.f32.mxu0 0.0
        %623 = vmatmul.mubr.f32.gmra.mxu0 %v535
        %v624 = vpop.f32.mrf.mxu0
        %v625 = vadd.f32 0.0, %v624
        %v626 = vpop.f32.mrf.mxu0
        %627 = vmatprep.mubr.f32.mxu0 0.0
        %628 = vmatmul.mubr.f32.gmra.mxu0 %v538
        %v629 = vpop.f32.mrf.mxu0
        %v630 = vadd.f32 0.0, %v629
        %v631 = vpop.f32.mrf.mxu0
        %632 = vmatprep.mubr.f32.mxu0 0.0
        %633 = vmatmul.mubr.f32.gmra.mxu0 %v541
        %v634 = vpop.f32.mrf.mxu0
        %v635 = vadd.f32 0.0, %v634
        %v636 = vpop.f32.mrf.mxu0
        %637 = vmatprep.mubr.f32.mxu0 0.0
        %638 = vmatmul.mubr.f32.gmra.mxu0 %v544
        %v639 = vpop.f32.mrf.mxu0
        %v640 = vadd.f32 0.0, %v639
        %v641 = vpop.f32.mrf.mxu0
        %642 = vmatprep.mubr.f32.mxu0 0.0
        %643 = vmatmul.mubr.f32.gmra.mxu0 %v547
        %v644 = vpop.f32.mrf.mxu0
        %v645 = vadd.f32 0.0, %v644
        %v646 = vpop.f32.mrf.mxu0
        %647 = vmatprep.mubr.f32.mxu0 0.0
        %648 = vmatmul.mubr.f32.gmra.mxu0 %v550
        %v649 = vpop.f32.mrf.mxu0
        %v650 = vadd.f32 0.0, %v649
        %v651 = vpop.f32.mrf.mxu0
        %652 = vmatprep.mubr.f32.mxu0 0.0
        %653 = vmatmul.mubr.f32.gmra.mxu0 %v553
        %v654 = vpop.f32.mrf.mxu0
        %v655 = vadd.f32 0.0, %v654
        %v656 = vpop.f32.mrf.mxu0
        %657 = vmatprep.mubr.f32.mxu0 0.0
        %658 = vmatmul.mubr.f32.gmra.mxu0 %v556
        %v659 = vpop.f32.mrf.mxu0
        %v660 = vadd.f32 0.0, %v659
        %v661 = vpop.f32.mrf.mxu0
        %662 = vdwg.mxu0
        %664 = vset.pattern.permute.xlu0 0
        %665 = vperm.xlu0 %664, %v625
        %v666 = vpop.permute.xlu0 %665
        %669 = vset.pattern.permute.xlu0 0
        %670 = vperm.xlu0 %669, %v630
        %v671 = vpop.permute.xlu0 %670
        %674 = vset.pattern.permute.xlu0 0
        %675 = vperm.xlu0 %674, %v635
        %v676 = vpop.permute.xlu0 %675
        %679 = vset.pattern.permute.xlu0 0
        %680 = vperm.xlu0 %679, %v640
        %v681 = vpop.permute.xlu0 %680
        %684 = vset.pattern.permute.xlu0 0
        %685 = vperm.xlu0 %684, %v645
        %v686 = vpop.permute.xlu0 %685
        %689 = vset.pattern.permute.xlu0 0
        %690 = vperm.xlu0 %689, %v650
        %v691 = vpop.permute.xlu0 %690
        %694 = vset.pattern.permute.xlu0 0
        %695 = vperm.xlu0 %694, %v655
        %v696 = vpop.permute.xlu0 %695
        %699 = vset.pattern.permute.xlu0 0
        %700 = vperm.xlu0 %699, %v660
        %v701 = vpop.permute.xlu0 %700
        %v703 = vsub.f32 %v379, %v666
        %v704 = vsub.f32 %v380, %v671
        %v705 = vsub.f32 %v381, %v676
        %v706 = vsub.f32 %v382, %v681
        %v707 = vsub.f32 %v383, %v686
        %v708 = vsub.f32 %v384, %v691
        %v709 = vsub.f32 %v385, %v696
        %v710 = vsub.f32 %v386, %v701
        %v711 = vmul.f32 %v703, %v703
        %v712 = vmul.f32 %v704, %v704
        %v713 = vmul.f32 %v705, %v705
        %v714 = vmul.f32 %v706, %v706
        %v715 = vmul.f32 %v707, %v707
        %v716 = vmul.f32 %v708, %v708
        %v717 = vmul.f32 %v709, %v709
        %v718 = vmul.f32 %v710, %v710
        %719 = vadd.xlane.f32.xlu0 %v711
        %v720 = vpop.xlane.xlu0 %719
        %721 = vadd.xlane.f32.xlu0 %v712
        %v722 = vpop.xlane.xlu0 %721
        %723 = vadd.xlane.f32.xlu0 %v713
        %v724 = vpop.xlane.xlu0 %723
        %725 = vadd.xlane.f32.xlu0 %v714
        %v726 = vpop.xlane.xlu0 %725
        %727 = vadd.xlane.f32.xlu0 %v715
        %v728 = vpop.xlane.xlu0 %727
        %729 = vadd.xlane.f32.xlu0 %v716
        %v730 = vpop.xlane.xlu0 %729
        %731 = vadd.xlane.f32.xlu0 %v717
        %v732 = vpop.xlane.xlu0 %731
        %733 = vadd.xlane.f32.xlu0 %v718
        %v734 = vpop.xlane.xlu0 %733
        %735 = vmatprep.subr.mxu0 0.0
        %736 = vmatpush1.msra.mxu0 0.0
        %737 = vmatprep.subr.mxu0 0.0
        %738 = vmatpush1.msra.mxu0 0.0
        %739 = vmatprep.subr.mxu0 0.0
        %740 = vmatpush1.msra.mxu0 0.0
        %741 = vmatprep.subr.mxu0 0.0
        %742 = vmatpush1.msra.mxu0 0.0
        %743 = vmatprep.subr.mxu0 0.0
        %744 = vmatpush1.msra.mxu0 0.0
        %745 = vmatprep.subr.mxu0 0.0
        %746 = vmatpush1.msra.mxu0 0.0
        %747 = vmatprep.subr.mxu0 0.0
        %748 = vmatpush1.msra.mxu0 0.0
        %749 = vmatprep.subr.mxu0 0.0
        %750 = vmatpush1.msra.mxu0 0.0
        %751 = vmatprep.subr.mxu0 0.0
        %752 = vmatpush1.msra.mxu0 %v734
        %753 = vmatprep.subr.mxu0 0.0
        %754 = vmatpush1.msra.mxu0 %v732
        %755 = vmatprep.subr.mxu0 0.0
        %756 = vmatpush1.msra.mxu0 %v730
        %757 = vmatprep.subr.mxu0 0.0
        %758 = vmatpush1.msra.mxu0 %v728
        %759 = vmatprep.subr.mxu0 0.0
        %760 = vmatpush1.msra.mxu0 %v726
        %761 = vmatprep.subr.mxu0 0.0
        %762 = vmatpush1.msra.mxu0 %v724
        %763 = vmatprep.subr.mxu0 0.0
        %764 = vmatpush1.msra.mxu0 %v722
        %765 = vmatprep.subr.mxu0 0.0
        %766 = vmatpush1.msra.mxu0 %v720
        %767 = vmatprep.subr.mxu0 0.0
        %768 = vmatpush2.msra.mxu0 0.0
        %769 = vmatprep.subr.mxu0 0.0
        %770 = vmatpush2.msra.mxu0 0.0
        %771 = vmatprep.subr.mxu0 0.0
        %772 = vmatpush2.msra.mxu0 0.0
        %773 = vmatprep.subr.mxu0 0.0
        %774 = vmatpush2.msra.mxu0 0.0
        %775 = vmatprep.subr.mxu0 0.0
        %776 = vmatpush2.msra.mxu0 0.0
        %777 = vmatprep.subr.mxu0 0.0
        %778 = vmatpush2.msra.mxu0 0.0
        %779 = vmatprep.subr.mxu0 0.0
        %780 = vmatpush2.msra.mxu0 0.0
        %781 = vmatprep.subr.mxu0 0.0
        %782 = vmatpush2.msra.mxu0 0.0
        %783 = vmatprep.subr.mxu0 0.0
        %784 = vmatpush2.msra.mxu0 0.0
        %785 = vmatprep.subr.mxu0 0.0
        %786 = vmatpush2.msra.mxu0 0.0
        %787 = vmatprep.subr.mxu0 0.0
        %788 = vmatpush2.msra.mxu0 0.0
        %789 = vmatprep.subr.mxu0 0.0
        %790 = vmatpush2.msra.mxu0 0.0
        %791 = vmatprep.subr.mxu0 0.0
        %792 = vmatpush2.msra.mxu0 0.0
        %793 = vmatprep.subr.mxu0 0.0
        %794 = vmatpush2.msra.mxu0 0.0
        %795 = vmatprep.subr.mxu0 0.0
        %796 = vmatpush2.msra.mxu0 0.0
        %797 = vmatprep.subr.mxu0 0.0
        %798 = vmatpush2.msra.mxu0 0.0
        %799 = vmatprep.mubr.f32.mxu0 0.0
        %800 = vmatmul.mubr.f32.gmra.mxu0 %v433
        %v801 = vpop.f32.mrf.mxu0
        %v802 = vadd.f32 0.0, %v801
        %v803 = vpop.f32.mrf.mxu0
        %804 = vmatprep.mubr.f32.mxu0 0.0
        %805 = vmatmul.mubr.f32.gmra.mxu0 %v436
        %v806 = vpop.f32.mrf.mxu0
        %v807 = vadd.f32 0.0, %v806
        %v808 = vpop.f32.mrf.mxu0
        %809 = vmatprep.mubr.f32.mxu0 0.0
        %810 = vmatmul.mubr.f32.gmra.mxu0 %v439
        %v811 = vpop.f32.mrf.mxu0
        %v812 = vadd.f32 0.0, %v811
        %v813 = vpop.f32.mrf.mxu0
        %814 = vmatprep.mubr.f32.mxu0 0.0
        %815 = vmatmul.mubr.f32.gmra.mxu0 %v442
        %v816 = vpop.f32.mrf.mxu0
        %v817 = vadd.f32 0.0, %v816
        %v818 = vpop.f32.mrf.mxu0
        %819 = vdwg.mxu0
        %v820 = vmul.f32 %v802, 0.00390625
        %v821 = vmul.f32 %v807, 0.00390625
        %v822 = vmul.f32 %v812, 0.00390625
        %v823 = vmul.f32 %v817, 0.00390625
        %824 = vmatprep.subr.mxu0 0.0
        %825 = vmatpush1.msra.mxu0 0.0
        %826 = vmatprep.subr.mxu0 0.0
        %827 = vmatpush1.msra.mxu0 0.0
        %828 = vmatprep.subr.mxu0 0.0
        %829 = vmatpush1.msra.mxu0 0.0
        %830 = vmatprep.subr.mxu0 0.0
        %831 = vmatpush1.msra.mxu0 0.0
        %832 = vmatprep.subr.mxu0 0.0
        %833 = vmatpush1.msra.mxu0 0.0
        %834 = vmatprep.subr.mxu0 0.0
        %835 = vmatpush1.msra.mxu0 0.0
        %836 = vmatprep.subr.mxu0 0.0
        %837 = vmatpush1.msra.mxu0 0.0
        %838 = vmatprep.subr.mxu0 0.0
        %839 = vmatpush1.msra.mxu0 0.0
        %840 = vmatprep.subr.mxu0 0.0
        %841 = vmatpush1.msra.mxu0 0.0
        %842 = vmatprep.subr.mxu0 0.0
        %843 = vmatpush1.msra.mxu0 0.0
        %844 = vmatprep.subr.mxu0 0.0
        %845 = vmatpush1.msra.mxu0 0.0
        %846 = vmatprep.subr.mxu0 0.0
        %847 = vmatpush1.msra.mxu0 0.0
        %848 = vmatprep.subr.mxu0 0.0
        %849 = vmatpush1.msra.mxu0 %v823
        %850 = vmatprep.subr.mxu0 0.0
        %851 = vmatpush1.msra.mxu0 %v822
        %852 = vmatprep.subr.mxu0 0.0
        %853 = vmatpush1.msra.mxu0 %v821
        %854 = vmatprep.subr.mxu0 0.0
        %855 = vmatpush1.msra.mxu0 %v820
        %856 = vmatprep.subr.mxu0 0.0
        %857 = vmatpush2.msra.mxu0 0.0
        %858 = vmatprep.subr.mxu0 0.0
        %859 = vmatpush2.msra.mxu0 0.0
        %860 = vmatprep.subr.mxu0 0.0
        %861 = vmatpush2.msra.mxu0 0.0
        %862 = vmatprep.subr.mxu0 0.0
        %863 = vmatpush2.msra.mxu0 0.0
        %864 = vmatprep.subr.mxu0 0.0
        %865 = vmatpush2.msra.mxu0 0.0
        %866 = vmatprep.subr.mxu0 0.0
        %867 = vmatpush2.msra.mxu0 0.0
        %868 = vmatprep.subr.mxu0 0.0
        %869 = vmatpush2.msra.mxu0 0.0
        %870 = vmatprep.subr.mxu0 0.0
        %871 = vmatpush2.msra.mxu0 0.0
        %872 = vmatprep.subr.mxu0 0.0
        %873 = vmatpush2.msra.mxu0 0.0
        %874 = vmatprep.subr.mxu0 0.0
        %875 = vmatpush2.msra.mxu0 0.0
        %876 = vmatprep.subr.mxu0 0.0
        %877 = vmatpush2.msra.mxu0 0.0
        %878 = vmatprep.subr.mxu0 0.0
        %879 = vmatpush2.msra.mxu0 0.0
        %880 = vmatprep.subr.mxu0 0.0
        %881 = vmatpush2.msra.mxu0 0.0
        %882 = vmatprep.subr.mxu0 0.0
        %883 = vmatpush2.msra.mxu0 0.0
        %884 = vmatprep.subr.mxu0 0.0
        %885 = vmatpush2.msra.mxu0 0.0
        %886 = vmatprep.subr.mxu0 0.0
        %887 = vmatpush2.msra.mxu0 0.0
        %888 = vmatprep.mubr.f32.mxu0 0.0
        %889 = vmatmul.mubr.f32.gmra.mxu0 %v535
        %v890 = vpop.f32.mrf.mxu0
        %v891 = vadd.f32 1e-06, %v890
        %v892 = vpop.f32.mrf.mxu0
        %893 = vmatprep.mubr.f32.mxu0 0.0
        %894 = vmatmul.mubr.f32.gmra.mxu0 %v538
        %v895 = vpop.f32.mrf.mxu0
        %v896 = vadd.f32 1e-06, %v895
        %v897 = vpop.f32.mrf.mxu0
        %898 = vmatprep.mubr.f32.mxu0 0.0
        %899 = vmatmul.mubr.f32.gmra.mxu0 %v541
        %v900 = vpop.f32.mrf.mxu0
        %v901 = vadd.f32 1e-06, %v900
        %v902 = vpop.f32.mrf.mxu0
        %903 = vmatprep.mubr.f32.mxu0 0.0
        %904 = vmatmul.mubr.f32.gmra.mxu0 %v544
        %v905 = vpop.f32.mrf.mxu0
        %v906 = vadd.f32 1e-06, %v905
        %v907 = vpop.f32.mrf.mxu0
        %908 = vmatprep.mubr.f32.mxu0 0.0
        %909 = vmatmul.mubr.f32.gmra.mxu0 %v547
        %v910 = vpop.f32.mrf.mxu0
        %v911 = vadd.f32 1e-06, %v910
        %v912 = vpop.f32.mrf.mxu0
        %913 = vmatprep.mubr.f32.mxu0 0.0
        %914 = vmatmul.mubr.f32.gmra.mxu0 %v550
        %v915 = vpop.f32.mrf.mxu0
        %v916 = vadd.f32 1e-06, %v915
        %v917 = vpop.f32.mrf.mxu0
        %918 = vmatprep.mubr.f32.mxu0 0.0
        %919 = vmatmul.mubr.f32.gmra.mxu0 %v553
        %v920 = vpop.f32.mrf.mxu0
        %v921 = vadd.f32 1e-06, %v920
        %v922 = vpop.f32.mrf.mxu0
        %923 = vmatprep.mubr.f32.mxu0 0.0
        %924 = vmatmul.mubr.f32.gmra.mxu0 %v556
        %v925 = vpop.f32.mrf.mxu0
        %v926 = vadd.f32 1e-06, %v925
        %v927 = vpop.f32.mrf.mxu0
        %928 = vdwg.mxu0
        %v929 = vrsqrt.pop %v891
        %v930 = vrsqrt.pop %v896
        %v931 = vrsqrt.pop %v901
        %v932 = vrsqrt.pop %v906
        %v933 = vrsqrt.pop %v911
        %v934 = vrsqrt.pop %v916
        %v935 = vrsqrt.pop %v921
        %v936 = vrsqrt.pop %v926
        %v937 = vld [vmem:[%s2] sm:$0xff]
        %v938 = vld [vmem:[%s2 + $0x8] sm:$0xff]
        %v939 = vld [vmem:[%s2 + $0x10] sm:$0xff]
        %v940 = vld [vmem:[%s2 + $0x18] sm:$0xff]
        %v941 = vld [vmem:[%s2 + $0x20] sm:$0xff]
        %v942 = vld [vmem:[%s2 + $0x28] sm:$0xff]
        %v943 = vld [vmem:[%s2 + $0x30] sm:$0xff]
        %v944 = vld [vmem:[%s2 + $0x38] sm:$0xff]
        %v945 = vmul.f32 %v929, %v937
        %v946 = vmul.f32 %v930, %v938
        %v947 = vmul.f32 %v931, %v939
        %v948 = vmul.f32 %v932, %v940
        %v949 = vmul.f32 %v933, %v941
        %v950 = vmul.f32 %v934, %v942
        %v951 = vmul.f32 %v935, %v943
        %v952 = vmul.f32 %v936, %v944
        %954 = vset.pattern.permute.xlu0 0
        %955 = vperm.xlu0 %954, %v945
        %v956 = vpop.permute.xlu0 %955
        %959 = vset.pattern.permute.xlu0 0
        %960 = vperm.xlu0 %959, %v946
        %v961 = vpop.permute.xlu0 %960
        %964 = vset.pattern.permute.xlu0 0
        %965 = vperm.xlu0 %964, %v947
        %v966 = vpop.permute.xlu0 %965
        %969 = vset.pattern.permute.xlu0 0
        %970 = vperm.xlu0 %969, %v948
        %v971 = vpop.permute.xlu0 %970
        %974 = vset.pattern.permute.xlu0 0
        %975 = vperm.xlu0 %974, %v949
        %v976 = vpop.permute.xlu0 %975
        %979 = vset.pattern.permute.xlu0 0
        %980 = vperm.xlu0 %979, %v950
        %v981 = vpop.permute.xlu0 %980
        %984 = vset.pattern.permute.xlu0 0
        %985 = vperm.xlu0 %984, %v951
        %v986 = vpop.permute.xlu0 %985
        %989 = vset.pattern.permute.xlu0 0
        %990 = vperm.xlu0 %989, %v952
        %v991 = vpop.permute.xlu0 %990
        %v993 = vmul.f32 %v703, %v956
        %v994 = vmul.f32 %v704, %v961
        %v995 = vmul.f32 %v705, %v966
        %v996 = vmul.f32 %v706, %v971
        %v997 = vmul.f32 %v707, %v976
        %v998 = vmul.f32 %v708, %v981
        %v999 = vmul.f32 %v709, %v986
        %v1000 = vmul.f32 %v710, %v991
        %v1001 = vld [vmem:[%s3] sm:$0xff]
        %v1002 = vld [vmem:[%s3 + $0x8] sm:$0xff]
        %v1003 = vld [vmem:[%s3 + $0x10] sm:$0xff]
        %v1004 = vld [vmem:[%s3 + $0x18] sm:$0xff]
        %v1005 = vld [vmem:[%s3 + $0x20] sm:$0xff]
        %v1006 = vld [vmem:[%s3 + $0x28] sm:$0xff]
        %v1007 = vld [vmem:[%s3 + $0x30] sm:$0xff]
        %v1008 = vld [vmem:[%s3 + $0x38] sm:$0xff]
        %1010 = vset.pattern.permute.xlu0 0
        %1011 = vperm.xlu0 %1010, %v1001
        %v1012 = vpop.permute.xlu0 %1011
        %1015 = vset.pattern.permute.xlu0 0
        %1016 = vperm.xlu0 %1015, %v1002
        %v1017 = vpop.permute.xlu0 %1016
        %1020 = vset.pattern.permute.xlu0 0
        %1021 = vperm.xlu0 %1020, %v1003
        %v1022 = vpop.permute.xlu0 %1021
        %1025 = vset.pattern.permute.xlu0 0
        %1026 = vperm.xlu0 %1025, %v1004
        %v1027 = vpop.permute.xlu0 %1026
        %1030 = vset.pattern.permute.xlu0 0
        %1031 = vperm.xlu0 %1030, %v1005
        %v1032 = vpop.permute.xlu0 %1031
        %1035 = vset.pattern.permute.xlu0 0
        %1036 = vperm.xlu0 %1035, %v1006
        %v1037 = vpop.permute.xlu0 %1036
        %1040 = vset.pattern.permute.xlu0 0
        %1041 = vperm.xlu0 %1040, %v1007
        %v1042 = vpop.permute.xlu0 %1041
        %1045 = vset.pattern.permute.xlu0 0
        %1046 = vperm.xlu0 %1045, %v1008
        %v1047 = vpop.permute.xlu0 %1046
        %v1049 = vadd.f32 %v993, %v1012
        %v1050 = vadd.f32 %v994, %v1017
        %v1051 = vadd.f32 %v995, %v1022
        %v1052 = vadd.f32 %v996, %v1027
        %v1053 = vadd.f32 %v997, %v1032
        %v1054 = vadd.f32 %v998, %v1037
        %v1055 = vadd.f32 %v999, %v1042
        %v1056 = vadd.f32 %v1000, %v1047
        %v1057 = vpack.c.bf16 %v1050, %v1049
        %v1058 = vpack.c.bf16 %v1052, %v1051
        %v1059 = vpack.c.bf16 %v1054, %v1053
        %v1060 = vpack.c.bf16 %v1056, %v1055
        %v1061 = vld [vmem:[%s6] sm:$0xf]
        %v1062 = vld [vmem:[%s6 + $0x4] sm:$0xf]
        %v1063 = vld [vmem:[%s6 + $0x8] sm:$0xf]
        %v1064 = vld [vmem:[%s6 + $0xc] sm:$0xf]
        %v1065 = vld [vmem:[%s6 + $0x10] sm:$0xf]
        %v1066 = vld [vmem:[%s6 + $0x14] sm:$0xf]
        %v1067 = vld [vmem:[%s6 + $0x18] sm:$0xf]
        %v1068 = vld [vmem:[%s6 + $0x1c] sm:$0xf]
        %v1069 = vld [vmem:[%s6 + $0x20] sm:$0xf]
        %v1070 = vld [vmem:[%s6 + $0x24] sm:$0xf]
        %v1071 = vld [vmem:[%s6 + $0x28] sm:$0xf]
        %v1072 = vld [vmem:[%s6 + $0x2c] sm:$0xf]
        %v1073 = vld [vmem:[%s6 + $0x30] sm:$0xf]
        %v1074 = vld [vmem:[%s6 + $0x34] sm:$0xf]
        %v1075 = vld [vmem:[%s6 + $0x38] sm:$0xf]
        %v1076 = vld [vmem:[%s6 + $0x3c] sm:$0xf]
        %v1077 = vld [vmem:[%s6 + $0x40] sm:$0xf]
        %v1078 = vld [vmem:[%s6 + $0x44] sm:$0xf]
        %v1079 = vld [vmem:[%s6 + $0x48] sm:$0xf]
        %v1080 = vld [vmem:[%s6 + $0x4c] sm:$0xf]
        %v1081 = vld [vmem:[%s6 + $0x50] sm:$0xf]
        %v1082 = vld [vmem:[%s6 + $0x54] sm:$0xf]
        %v1083 = vld [vmem:[%s6 + $0x58] sm:$0xf]
        %v1084 = vld [vmem:[%s6 + $0x5c] sm:$0xf]
        %v1085 = vld [vmem:[%s7] sm:$0xff]
        %v1086 = vld [vmem:[%s7 + $0x8] sm:$0xff]
        %v1087 = vld [vmem:[%s7 + $0x10] sm:$0xff]
        %v1088 = vld [vmem:[%s7 + $0x18] sm:$0xff]
        %v1089 = vld [vmem:[%s7 + $0x20] sm:$0xff]
        %v1090 = vld [vmem:[%s7 + $0x28] sm:$0xff]
        %v1091 = vld [vmem:[%s7 + $0x30] sm:$0xff]
        %v1092 = vld [vmem:[%s7 + $0x38] sm:$0xff]
        %v1093 = vld [vmem:[%s7 + $0x40] sm:$0xff]
        %v1094 = vld [vmem:[%s7 + $0x48] sm:$0xff]
        %v1095 = vld [vmem:[%s7 + $0x50] sm:$0xff]
        %v1096 = vld [vmem:[%s7 + $0x58] sm:$0xff]
        %v1097 = vld [vmem:[%s7 + $0x60] sm:$0xff]
        %v1098 = vld [vmem:[%s7 + $0x68] sm:$0xff]
        %v1099 = vld [vmem:[%s7 + $0x70] sm:$0xff]
        %v1100 = vld [vmem:[%s7 + $0x78] sm:$0xff]
        %v1101 = vld [vmem:[%s7 + $0x80] sm:$0xff]
        %v1102 = vld [vmem:[%s7 + $0x88] sm:$0xff]
        %v1103 = vld [vmem:[%s7 + $0x90] sm:$0xff]
        %v1104 = vld [vmem:[%s7 + $0x98] sm:$0xff]
        %v1105 = vld [vmem:[%s7 + $0xa0] sm:$0xff]
        %v1106 = vld [vmem:[%s7 + $0xa8] sm:$0xff]
        %v1107 = vld [vmem:[%s7 + $0xb0] sm:$0xff]
        %v1108 = vld [vmem:[%s7 + $0xb8] sm:$0xff]
        %1110 = vset.pattern.permute.xlu0 0
        %1111 = vperm.xlu0 %1110, %v1085
        %v1112 = vpop.permute.xlu0 %1111
        %1115 = vset.pattern.permute.xlu0 0
        %1116 = vperm.xlu0 %1115, %v1086
        %v1117 = vpop.permute.xlu0 %1116
        %1120 = vset.pattern.permute.xlu0 0
        %1121 = vperm.xlu0 %1120, %v1087
        %v1122 = vpop.permute.xlu0 %1121
        %1125 = vset.pattern.permute.xlu0 0
        %1126 = vperm.xlu0 %1125, %v1088
        %v1127 = vpop.permute.xlu0 %1126
        %1130 = vset.pattern.permute.xlu0 0
        %1131 = vperm.xlu0 %1130, %v1089
        %v1132 = vpop.permute.xlu0 %1131
        %1135 = vset.pattern.permute.xlu0 0
        %1136 = vperm.xlu0 %1135, %v1090
        %v1137 = vpop.permute.xlu0 %1136
        %1140 = vset.pattern.permute.xlu0 0
        %1141 = vperm.xlu0 %1140, %v1091
        %v1142 = vpop.permute.xlu0 %1141
        %1145 = vset.pattern.permute.xlu0 0
        %1146 = vperm.xlu0 %1145, %v1092
        %v1147 = vpop.permute.xlu0 %1146
        %1150 = vset.pattern.permute.xlu0 0
        %1151 = vperm.xlu0 %1150, %v1093
        %v1152 = vpop.permute.xlu0 %1151
        %1155 = vset.pattern.permute.xlu0 0
        %1156 = vperm.xlu0 %1155, %v1094
        %v1157 = vpop.permute.xlu0 %1156
        %1160 = vset.pattern.permute.xlu0 0
        %1161 = vperm.xlu0 %1160, %v1095
        %v1162 = vpop.permute.xlu0 %1161
        %1165 = vset.pattern.permute.xlu0 0
        %1166 = vperm.xlu0 %1165, %v1096
        %v1167 = vpop.permute.xlu0 %1166
        %1170 = vset.pattern.permute.xlu0 0
        %1171 = vperm.xlu0 %1170, %v1097
        %v1172 = vpop.permute.xlu0 %1171
        %1175 = vset.pattern.permute.xlu0 0
        %1176 = vperm.xlu0 %1175, %v1098
        %v1177 = vpop.permute.xlu0 %1176
        %1180 = vset.pattern.permute.xlu0 0
        %1181 = vperm.xlu0 %1180, %v1099
        %v1182 = vpop.permute.xlu0 %1181
        %1185 = vset.pattern.permute.xlu0 0
        %1186 = vperm.xlu0 %1185, %v1100
        %v1187 = vpop.permute.xlu0 %1186
        %1190 = vset.pattern.permute.xlu0 0
        %1191 = vperm.xlu0 %1190, %v1101
        %v1192 = vpop.permute.xlu0 %1191
        %1195 = vset.pattern.permute.xlu0 0
        %1196 = vperm.xlu0 %1195, %v1102
        %v1197 = vpop.permute.xlu0 %1196
        %1200 = vset.pattern.permute.xlu0 0
        %1201 = vperm.xlu0 %1200, %v1103
        %v1202 = vpop.permute.xlu0 %1201
        %1205 = vset.pattern.permute.xlu0 0
        %1206 = vperm.xlu0 %1205, %v1104
        %v1207 = vpop.permute.xlu0 %1206
        %1210 = vset.pattern.permute.xlu0 0
        %1211 = vperm.xlu0 %1210, %v1105
        %v1212 = vpop.permute.xlu0 %1211
        %1215 = vset.pattern.permute.xlu0 0
        %1216 = vperm.xlu0 %1215, %v1106
        %v1217 = vpop.permute.xlu0 %1216
        %1220 = vset.pattern.permute.xlu0 0
        %1221 = vperm.xlu0 %1220, %v1107
        %v1222 = vpop.permute.xlu0 %1221
        %1225 = vset.pattern.permute.xlu0 0
        %1226 = vperm.xlu0 %1225, %v1108
        %v1227 = vpop.permute.xlu0 %1226
        %v1253 = vunpack.c.l.b16 %v1061
        %v1254 = vunpack.c.l.b16 %v1062
        %v1255 = vunpack.c.l.b16 %v1063
        %v1256 = vunpack.c.l.b16 %v1064
        %v1257 = vunpack.c.l.b16 %v1065
        %v1258 = vunpack.c.l.b16 %v1066
        %v1259 = vunpack.c.l.b16 %v1067
        %v1260 = vunpack.c.l.b16 %v1068
        %v1261 = vunpack.c.l.b16 %v1069
        %v1262 = vunpack.c.l.b16 %v1070
        %v1263 = vunpack.c.l.b16 %v1071
        %v1264 = vunpack.c.l.b16 %v1072
        %v1265 = vunpack.c.l.b16 %v1073
        %v1266 = vunpack.c.l.b16 %v1074
        %v1267 = vunpack.c.l.b16 %v1075
        %v1268 = vunpack.c.l.b16 %v1076
        %v1269 = vunpack.c.l.b16 %v1077
        %v1270 = vunpack.c.l.b16 %v1078
        %v1271 = vunpack.c.l.b16 %v1079
        %v1272 = vunpack.c.l.b16 %v1080
        %v1273 = vunpack.c.l.b16 %v1081
        %v1274 = vunpack.c.l.b16 %v1082
        %v1275 = vunpack.c.l.b16 %v1083
        %v1276 = vunpack.c.l.b16 %v1084
        %v1277 = vpack.c.b16 %v1254, %v1253
        %v1278 = vpack.c.b16 %v1256, %v1255
        %v1279 = vpack.c.b16 %v1258, %v1257
        %v1280 = vpack.c.b16 %v1260, %v1259
        %v1281 = vpack.c.b16 %v1262, %v1261
        %v1282 = vpack.c.b16 %v1264, %v1263
        %v1283 = vpack.c.b16 %v1266, %v1265
        %v1284 = vpack.c.b16 %v1268, %v1267
        %v1285 = vpack.c.b16 %v1270, %v1269
        %v1286 = vpack.c.b16 %v1272, %v1271
        %v1287 = vpack.c.b16 %v1274, %v1273
        %v1288 = vpack.c.b16 %v1276, %v1275
        %v1290 = vsel %vm431, %v1277, 0
        %v1293 = vsel %vm431, %v1278, 0
        %v1296 = vsel %vm431, %v1279, 0
        %v1299 = vsel %vm431, %v1280, 0
        %v1302 = vsel %vm431, %v1281, 0
        %v1305 = vsel %vm431, %v1282, 0
        %v1308 = vsel %vm431, %v1283, 0
        %v1311 = vsel %vm431, %v1284, 0
        %v1314 = vsel %vm431, %v1285, 0
        %v1317 = vsel %vm431, %v1286, 0
        %v1320 = vsel %vm431, %v1287, 0
        %v1323 = vsel %vm431, %v1288, 0
        %1325 = vmatprep.subr.bf16.mxu0 0
        %1326 = vmatpush1.bf16.msra.mxu0 0
        %1327 = vmatprep.subr.bf16.mxu0 0
        %1328 = vmatpush1.bf16.msra.mxu0 0
        %1329 = vmatprep.subr.bf16.mxu0 0
        %1330 = vmatpush1.bf16.msra.mxu0 0
        %1331 = vmatprep.subr.bf16.mxu0 0
        %1332 = vmatpush1.bf16.msra.mxu0 0
        %1333 = vmatprep.subr.bf16.mxu0 0
        %1334 = vmatpush1.bf16.msra.mxu0 %v1060
        %1335 = vmatprep.subr.bf16.mxu0 0
        %1336 = vmatpush1.bf16.msra.mxu0 %v1059
        %1337 = vmatprep.subr.bf16.mxu0 0
        %1338 = vmatpush1.bf16.msra.mxu0 %v1058
        %1339 = vmatprep.subr.bf16.mxu0 0
        %1340 = vmatpush1.bf16.msra.mxu0 %v1057
        %1341 = vmatprep.subr.bf16.mxu0 0
        %1342 = vmatpush2.bf16.msra.mxu0 0
        %1343 = vmatprep.subr.bf16.mxu0 0
        %1344 = vmatpush2.bf16.msra.mxu0 0
        %1345 = vmatprep.subr.bf16.mxu0 0
        %1346 = vmatpush2.bf16.msra.mxu0 0
        %1347 = vmatprep.subr.bf16.mxu0 0
        %1348 = vmatpush2.bf16.msra.mxu0 0
        %1349 = vmatprep.subr.bf16.mxu0 0
        %1350 = vmatpush2.bf16.msra.mxu0 0
        %1351 = vmatprep.subr.bf16.mxu0 0
        %1352 = vmatpush2.bf16.msra.mxu0 0
        %1353 = vmatprep.subr.bf16.mxu0 0
        %1354 = vmatpush2.bf16.msra.mxu0 0
        %1355 = vmatprep.subr.bf16.mxu0 0
        %1356 = vmatpush2.bf16.msra.mxu0 0
        %1357 = vmatprep.mubr.bf16.mxu0 0
        %1358 = vmatmul.mubr.bf16.gmra.mxu0 %v1290
        %v1359 = vpop.f32.mrf.mxu0
        %v1360 = vadd.f32 %v1112, %v1359
        %v1361 = vpop.f32.mrf.mxu0
        %v1362 = vpop.f32.mrf.mxu0
        %v1363 = vadd.f32 %v1117, %v1362
        %v1364 = vpop.f32.mrf.mxu0
        %1365 = vmatprep.mubr.bf16.mxu0 0
        %1366 = vmatmul.mubr.bf16.gmra.mxu0 %v1293
        %v1367 = vpop.f32.mrf.mxu0
        %v1368 = vadd.f32 %v1122, %v1367
        %v1369 = vpop.f32.mrf.mxu0
        %v1370 = vpop.f32.mrf.mxu0
        %v1371 = vadd.f32 %v1127, %v1370
        %v1372 = vpop.f32.mrf.mxu0
        %1373 = vmatprep.mubr.bf16.mxu0 0
        %1374 = vmatmul.mubr.bf16.gmra.mxu0 %v1296
        %v1375 = vpop.f32.mrf.mxu0
        %v1376 = vadd.f32 %v1132, %v1375
        %v1377 = vpop.f32.mrf.mxu0
        %v1378 = vpop.f32.mrf.mxu0
        %v1379 = vadd.f32 %v1137, %v1378
        %v1380 = vpop.f32.mrf.mxu0
        %1381 = vmatprep.mubr.bf16.mxu0 0
        %1382 = vmatmul.mubr.bf16.gmra.mxu0 %v1299
        %v1383 = vpop.f32.mrf.mxu0
        %v1384 = vadd.f32 %v1142, %v1383
        %v1385 = vpop.f32.mrf.mxu0
        %v1386 = vpop.f32.mrf.mxu0
        %v1387 = vadd.f32 %v1147, %v1386
        %v1388 = vpop.f32.mrf.mxu0
        %1389 = vmatprep.mubr.bf16.mxu0 0
        %1390 = vmatmul.mubr.bf16.gmra.mxu0 %v1302
        %v1391 = vpop.f32.mrf.mxu0
        %v1392 = vadd.f32 %v1152, %v1391
        %v1393 = vpop.f32.mrf.mxu0
        %v1394 = vpop.f32.mrf.mxu0
        %v1395 = vadd.f32 %v1157, %v1394
        %v1396 = vpop.f32.mrf.mxu0
        %1397 = vmatprep.mubr.bf16.mxu0 0
        %1398 = vmatmul.mubr.bf16.gmra.mxu0 %v1305
        %v1399 = vpop.f32.mrf.mxu0
        %v1400 = vadd.f32 %v1162, %v1399
        %v1401 = vpop.f32.mrf.mxu0
        %v1402 = vpop.f32.mrf.mxu0
        %v1403 = vadd.f32 %v1167, %v1402
        %v1404 = vpop.f32.mrf.mxu0
        %1405 = vmatprep.mubr.bf16.mxu0 0
        %1406 = vmatmul.mubr.bf16.gmra.mxu0 %v1308
        %v1407 = vpop.f32.mrf.mxu0
        %v1408 = vadd.f32 %v1172, %v1407
        %v1409 = vpop.f32.mrf.mxu0
        %v1410 = vpop.f32.mrf.mxu0
        %v1411 = vadd.f32 %v1177, %v1410
        %v1412 = vpop.f32.mrf.mxu0
        %1413 = vmatprep.mubr.bf16.mxu0 0
        %1414 = vmatmul.mubr.bf16.gmra.mxu0 %v1311
        %v1415 = vpop.f32.mrf.mxu0
        %v1416 = vadd.f32 %v1182, %v1415
        %v1417 = vpop.f32.mrf.mxu0
        %v1418 = vpop.f32.mrf.mxu0
        %v1419 = vadd.f32 %v1187, %v1418
        %v1420 = vpop.f32.mrf.mxu0
        %1421 = vmatprep.mubr.bf16.mxu0 0
        %1422 = vmatmul.mubr.bf16.gmra.mxu0 %v1314
        %v1423 = vpop.f32.mrf.mxu0
        %v1424 = vadd.f32 %v1192, %v1423
        %v1425 = vpop.f32.mrf.mxu0
        %v1426 = vpop.f32.mrf.mxu0
        %v1427 = vadd.f32 %v1197, %v1426
        %v1428 = vpop.f32.mrf.mxu0
        %1429 = vmatprep.mubr.bf16.mxu0 0
        %1430 = vmatmul.mubr.bf16.gmra.mxu0 %v1317
        %v1431 = vpop.f32.mrf.mxu0
        %v1432 = vadd.f32 %v1202, %v1431
        %v1433 = vpop.f32.mrf.mxu0
        %v1434 = vpop.f32.mrf.mxu0
        %v1435 = vadd.f32 %v1207, %v1434
        %v1436 = vpop.f32.mrf.mxu0
        %1437 = vmatprep.mubr.bf16.mxu0 0
        %1438 = vmatmul.mubr.bf16.gmra.mxu0 %v1320
        %v1439 = vpop.f32.mrf.mxu0
        %v1440 = vadd.f32 %v1212, %v1439
        %v1441 = vpop.f32.mrf.mxu0
        %v1442 = vpop.f32.mrf.mxu0
        %v1443 = vadd.f32 %v1217, %v1442
        %v1444 = vpop.f32.mrf.mxu0
        %1445 = vmatprep.mubr.bf16.mxu0 0
        %1446 = vmatmul.mubr.bf16.gmra.mxu0 %v1323
        %v1447 = vpop.f32.mrf.mxu0
        %v1448 = vadd.f32 %v1222, %v1447
        %v1449 = vpop.f32.mrf.mxu0
        %v1450 = vpop.f32.mrf.mxu0
        %v1451 = vadd.f32 %v1227, %v1450
        %v1452 = vpop.f32.mrf.mxu0
        %1453 = vdwg.mxu0
        %v1454 = vpack.c.bf16 %v1363, %v1360
        %v1455 = vpack.c.bf16 %v1371, %v1368
        %v1456 = vpack.c.bf16 %v1379, %v1376
        %v1457 = vpack.c.bf16 %v1387, %v1384
        %v1458 = vpack.c.bf16 %v1395, %v1392
        %v1459 = vpack.c.bf16 %v1403, %v1400
        %v1460 = vpack.c.bf16 %v1411, %v1408
        %v1461 = vpack.c.bf16 %v1419, %v1416
        %v1462 = vpack.c.bf16 %v1427, %v1424
        %v1463 = vpack.c.bf16 %v1435, %v1432
        %v1464 = vpack.c.bf16 %v1443, %v1440
        %v1465 = vpack.c.bf16 %v1451, %v1448
        %1466 = vxpose.xlu0.c.b16.start [1/8] %v1458, 128
        %1467 = vxpose.xlu0.c.b16.cont [2/8] %v1459, 128
        %1468 = vxpose.xlu0.c.b16.cont [3/8] %v1460, 128
        %1469 = vxpose.xlu0.c.b16.cont [4/8] %v1461, 128
        %1470 = vxpose.xlu0.c.b16.cont [5/8] 0, 128
        %1471 = vxpose.xlu0.c.b16.cont [6/8] 0, 128
        %1472 = vxpose.xlu0.c.b16.cont [7/8] 0, 128
        %1473 = vxpose.xlu0.c.b16.end [8/8] 0, 128
        %v1474 = vpop.trf.xlu0
        %v1475 = vpop.trf.xlu0
        %v1476 = vpop.trf.xlu0
        %v1477 = vpop.trf.xlu0
        %v1478 = vpop.trf.xlu0
        %v1479 = vpop.trf.xlu0
        %v1480 = vpop.trf.xlu0
        %v1481 = vpop.trf.xlu0
        %v1483 = vsel %vm431, %v1474, 0
        %v1486 = vsel %vm431, %v1475, 0
        %v1489 = vsel %vm431, %v1476, 0
        %v1492 = vsel %vm431, %v1477, 0
        %v1495 = vsel %vm431, %v1478, 0
        %v1498 = vsel %vm431, %v1479, 0
        %v1501 = vsel %vm431, %v1480, 0
        %v1504 = vsel %vm431, %v1481, 0
        %1506 = vmatprep.subr.bf16.mxu0 0
        %1507 = vmatpush1.bf16.msra.mxu0 0
        %1508 = vmatprep.subr.bf16.mxu0 0
        %1509 = vmatpush1.bf16.msra.mxu0 0
        %1510 = vmatprep.subr.bf16.mxu0 0
        %1511 = vmatpush1.bf16.msra.mxu0 0
        %1512 = vmatprep.subr.bf16.mxu0 0
        %1513 = vmatpush1.bf16.msra.mxu0 0
        %1514 = vmatprep.subr.bf16.mxu0 0
        %1515 = vmatpush1.bf16.msra.mxu0 %v1457
        %1516 = vmatprep.subr.bf16.mxu0 0
        %1517 = vmatpush1.bf16.msra.mxu0 %v1456
        %1518 = vmatprep.subr.bf16.mxu0 0
        %1519 = vmatpush1.bf16.msra.mxu0 %v1455
        %1520 = vmatprep.subr.bf16.mxu0 0
        %1521 = vmatpush1.bf16.msra.mxu0 %v1454
        %1522 = vmatprep.subr.bf16.mxu0 0
        %1523 = vmatpush2.bf16.msra.mxu0 0
        %1524 = vmatprep.subr.bf16.mxu0 0
        %1525 = vmatpush2.bf16.msra.mxu0 0
        %1526 = vmatprep.subr.bf16.mxu0 0
        %1527 = vmatpush2.bf16.msra.mxu0 0
        %1528 = vmatprep.subr.bf16.mxu0 0
        %1529 = vmatpush2.bf16.msra.mxu0 0
        %1530 = vmatprep.subr.bf16.mxu0 0
        %1531 = vmatpush2.bf16.msra.mxu0 0
        %1532 = vmatprep.subr.bf16.mxu0 0
        %1533 = vmatpush2.bf16.msra.mxu0 0
        %1534 = vmatprep.subr.bf16.mxu0 0
        %1535 = vmatpush2.bf16.msra.mxu0 0
        %1536 = vmatprep.subr.bf16.mxu0 0
        %1537 = vmatpush2.bf16.msra.mxu0 0
        %1538 = vmatprep.mubr.bf16.mxu0 0
        %1539 = vmatmul.mubr.bf16.gmra.mxu0 %v1483
        %v1540 = vpop.f32.mrf.mxu0
        %v1541 = vadd.f32 0.0, %v1540
        %v1542 = vpop.f32.mrf.mxu0
        %v1543 = vpop.f32.mrf.mxu0
        %v1544 = vadd.f32 0.0, %v1543
        %v1545 = vpop.f32.mrf.mxu0
        %1546 = vmatprep.mubr.bf16.mxu0 0
        %1547 = vmatmul.mubr.bf16.gmra.mxu0 %v1486
        %v1548 = vpop.f32.mrf.mxu0
        %v1549 = vadd.f32 0.0, %v1548
        %v1550 = vpop.f32.mrf.mxu0
        %v1551 = vpop.f32.mrf.mxu0
        %v1552 = vadd.f32 0.0, %v1551
        %v1553 = vpop.f32.mrf.mxu0
        %1554 = vmatprep.mubr.bf16.mxu0 0
        %1555 = vmatmul.mubr.bf16.gmra.mxu0 %v1489
        %v1556 = vpop.f32.mrf.mxu0
        %v1557 = vadd.f32 0.0, %v1556
        %v1558 = vpop.f32.mrf.mxu0
        %v1559 = vpop.f32.mrf.mxu0
        %v1560 = vadd.f32 0.0, %v1559
        %v1561 = vpop.f32.mrf.mxu0
        %1562 = vmatprep.mubr.bf16.mxu0 0
        %1563 = vmatmul.mubr.bf16.gmra.mxu0 %v1492
        %v1564 = vpop.f32.mrf.mxu0
        %v1565 = vadd.f32 0.0, %v1564
        %v1566 = vpop.f32.mrf.mxu0
        %v1567 = vpop.f32.mrf.mxu0
        %v1568 = vadd.f32 0.0, %v1567
        %v1569 = vpop.f32.mrf.mxu0
        %1570 = vmatprep.mubr.bf16.mxu0 0
        %1571 = vmatmul.mubr.bf16.gmra.mxu0 %v1495
        %v1572 = vpop.f32.mrf.mxu0
        %v1573 = vadd.f32 0.0, %v1572
        %v1574 = vpop.f32.mrf.mxu0
        %v1575 = vpop.f32.mrf.mxu0
        %v1576 = vadd.f32 0.0, %v1575
        %v1577 = vpop.f32.mrf.mxu0
        %1578 = vmatprep.mubr.bf16.mxu0 0
        %1579 = vmatmul.mubr.bf16.gmra.mxu0 %v1498
        %v1580 = vpop.f32.mrf.mxu0
        %v1581 = vadd.f32 0.0, %v1580
        %v1582 = vpop.f32.mrf.mxu0
        %v1583 = vpop.f32.mrf.mxu0
        %v1584 = vadd.f32 0.0, %v1583
        %v1585 = vpop.f32.mrf.mxu0
        %1586 = vmatprep.mubr.bf16.mxu0 0
        %1587 = vmatmul.mubr.bf16.gmra.mxu0 %v1501
        %v1588 = vpop.f32.mrf.mxu0
        %v1589 = vadd.f32 0.0, %v1588
        %v1590 = vpop.f32.mrf.mxu0
        %v1591 = vpop.f32.mrf.mxu0
        %v1592 = vadd.f32 0.0, %v1591
        %v1593 = vpop.f32.mrf.mxu0
        %1594 = vmatprep.mubr.bf16.mxu0 0
        %1595 = vmatmul.mubr.bf16.gmra.mxu0 %v1504
        %v1596 = vpop.f32.mrf.mxu0
        %v1597 = vadd.f32 0.0, %v1596
        %v1598 = vpop.f32.mrf.mxu0
        %v1599 = vpop.f32.mrf.mxu0
        %v1600 = vadd.f32 0.0, %v1599
        %v1601 = vpop.f32.mrf.mxu0
        %1602 = vdwg.mxu0
        %v1603 = vmax.f32 %v1541, %v1557
        %v1604 = vmax.f32 %v1544, %v1560
        %v1605 = vmax.f32 %v1549, %v1565
        %v1606 = vmax.f32 %v1552, %v1568
        %v1607 = vmax.f32 %v1603, %v1573
        %v1608 = vmax.f32 %v1604, %v1576
        %v1609 = vmax.f32 %v1605, %v1581
        %v1610 = vmax.f32 %v1606, %v1584
        %v1611 = vmax.f32 %v1607, %v1589
        %v1612 = vmax.f32 %v1608, %v1592
        %v1613 = vmax.f32 %v1609, %v1597
        %v1614 = vmax.f32 %v1610, %v1600
        %v1615 = vmax.f32 %v1611, %v1612
        %v1616 = vmax.f32 %v1613, %v1614
        %v1617 = vmax.f32 %v1615, %v1616
        %v1618 = vrot.slane %v1617, 4
        %v1619 = vmax.f32 %v1617, %v1618
        %v1620 = vrot.slane %v1619, 2
        %v1621 = vmax.f32 %v1619, %v1620
        %v1622 = vrot.slane %v1621, 1
        %v1623 = vmax.f32 %v1621, %v1622
        %v1624 = vsub.f32 %v1541, %v1623
        %v1625 = vsub.f32 %v1544, %v1623
        %v1626 = vsub.f32 %v1549, %v1623
        %v1627 = vsub.f32 %v1552, %v1623
        %v1628 = vsub.f32 %v1557, %v1623
        %v1629 = vsub.f32 %v1560, %v1623
        %v1630 = vsub.f32 %v1565, %v1623
        %v1631 = vsub.f32 %v1568, %v1623
        %v1632 = vsub.f32 %v1573, %v1623
        %v1633 = vsub.f32 %v1576, %v1623
        %v1634 = vsub.f32 %v1581, %v1623
        %v1635 = vsub.f32 %v1584, %v1623
        %v1636 = vsub.f32 %v1589, %v1623
        %v1637 = vsub.f32 %v1592, %v1623
        %v1638 = vsub.f32 %v1597, %v1623
        %v1639 = vsub.f32 %v1600, %v1623
        %v1640 = vmul.f32 %v1624, 1.442695
        %v1641 = vpow.pop %v1640
        %v1642 = vmul.f32 %v1625, 1.442695
        %v1643 = vpow.pop %v1642
        %v1644 = vmul.f32 %v1626, 1.442695
        %v1645 = vpow.pop %v1644
        %v1646 = vmul.f32 %v1627, 1.442695
        %v1647 = vpow.pop %v1646
        %v1648 = vmul.f32 %v1628, 1.442695
        %v1649 = vpow.pop %v1648
        %v1650 = vmul.f32 %v1629, 1.442695
        %v1651 = vpow.pop %v1650
        %v1652 = vmul.f32 %v1630, 1.442695
        %v1653 = vpow.pop %v1652
        %v1654 = vmul.f32 %v1631, 1.442695
        %v1655 = vpow.pop %v1654
        %v1656 = vmul.f32 %v1632, 1.442695
        %v1657 = vpow.pop %v1656
        %v1658 = vmul.f32 %v1633, 1.442695
        %v1659 = vpow.pop %v1658
        %v1660 = vmul.f32 %v1634, 1.442695
        %v1661 = vpow.pop %v1660
        %v1662 = vmul.f32 %v1635, 1.442695
        %v1663 = vpow.pop %v1662
        %v1664 = vmul.f32 %v1636, 1.442695
        %v1665 = vpow.pop %v1664
        %v1666 = vmul.f32 %v1637, 1.442695
        %v1667 = vpow.pop %v1666
        %v1668 = vmul.f32 %v1638, 1.442695
        %v1669 = vpow.pop %v1668
        %v1670 = vmul.f32 %v1639, 1.442695
        %v1671 = vpow.pop %v1670
        %v1672 = vadd.f32 %v1641, %v1643
        %v1673 = vadd.f32 %v1672, %v1645
        %v1674 = vadd.f32 %v1673, %v1647
        %v1675 = vadd.f32 %v1674, %v1649
        %v1676 = vadd.f32 %v1675, %v1651
        %v1677 = vadd.f32 %v1676, %v1653
        %v1678 = vadd.f32 %v1677, %v1655
        %v1679 = vadd.f32 %v1678, %v1657
        %v1680 = vadd.f32 %v1679, %v1659
        %v1681 = vadd.f32 %v1680, %v1661
        %v1682 = vadd.f32 %v1681, %v1663
        %v1683 = vadd.f32 %v1682, %v1665
        %v1684 = vadd.f32 %v1683, %v1667
        %v1685 = vadd.f32 %v1684, %v1669
        %v1686 = vadd.f32 %v1685, %v1671
        %v1687 = vrot.slane %v1686, 4
        %v1688 = vadd.f32 %v1686, %v1687
        %v1689 = vrot.slane %v1688, 2
        %v1690 = vadd.f32 %v1688, %v1689
        %v1691 = vrot.slane %v1690, 1
        %v1692 = vadd.f32 %v1690, %v1691
        %v1693 = vrcp.pop %v1692
        %v1694 = vmul.f32 %v1641, %v1693
        %v1695 = vmul.f32 %v1643, %v1693
        %v1696 = vmul.f32 %v1645, %v1693
        %v1697 = vmul.f32 %v1647, %v1693
        %v1698 = vmul.f32 %v1649, %v1693
        %v1699 = vmul.f32 %v1651, %v1693
        %v1700 = vmul.f32 %v1653, %v1693
        %v1701 = vmul.f32 %v1655, %v1693
        %v1702 = vmul.f32 %v1657, %v1693
        %v1703 = vmul.f32 %v1659, %v1693
        %v1704 = vmul.f32 %v1661, %v1693
        %v1705 = vmul.f32 %v1663, %v1693
        %v1706 = vmul.f32 %v1665, %v1693
        %v1707 = vmul.f32 %v1667, %v1693
        %v1708 = vmul.f32 %v1669, %v1693
        %v1709 = vmul.f32 %v1671, %v1693
        %1711 = vset.pattern.permute.xlu0 0
        %1712 = vperm.xlu0 %1711, %v387
        %v1713 = vpop.permute.xlu0 %1712
        %1716 = vset.pattern.permute.xlu0 0
        %1717 = vperm.xlu0 %1716, %v388
        %v1718 = vpop.permute.xlu0 %1717
        %1721 = vset.pattern.permute.xlu0 0
        %1722 = vperm.xlu0 %1721, %v389
        %v1723 = vpop.permute.xlu0 %1722
        %1726 = vset.pattern.permute.xlu0 0
        %1727 = vperm.xlu0 %1726, %v390
        %v1728 = vpop.permute.xlu0 %1727
        %1731 = vset.pattern.permute.xlu0 0
        %1732 = vperm.xlu0 %1731, %v391
        %v1733 = vpop.permute.xlu0 %1732
        %1736 = vset.pattern.permute.xlu0 0
        %1737 = vperm.xlu0 %1736, %v392
        %v1738 = vpop.permute.xlu0 %1737
        %1741 = vset.pattern.permute.xlu0 0
        %1742 = vperm.xlu0 %1741, %v393
        %v1743 = vpop.permute.xlu0 %1742
        %1746 = vset.pattern.permute.xlu0 0
        %1747 = vperm.xlu0 %1746, %v394
        %v1748 = vpop.permute.xlu0 %1747
        %1751 = vset.pattern.permute.xlu0 0
        %1752 = vperm.xlu0 %1751, %v395
        %v1753 = vpop.permute.xlu0 %1752
        %1756 = vset.pattern.permute.xlu0 0
        %1757 = vperm.xlu0 %1756, %v396
        %v1758 = vpop.permute.xlu0 %1757
        %1761 = vset.pattern.permute.xlu0 0
        %1762 = vperm.xlu0 %1761, %v397
        %v1763 = vpop.permute.xlu0 %1762
        %1766 = vset.pattern.permute.xlu0 0
        %1767 = vperm.xlu0 %1766, %v398
        %v1768 = vpop.permute.xlu0 %1767
        %1771 = vset.pattern.permute.xlu0 0
        %1772 = vperm.xlu0 %1771, %v399
        %v1773 = vpop.permute.xlu0 %1772
        %1776 = vset.pattern.permute.xlu0 0
        %1777 = vperm.xlu0 %1776, %v400
        %v1778 = vpop.permute.xlu0 %1777
        %1781 = vset.pattern.permute.xlu0 0
        %1782 = vperm.xlu0 %1781, %v401
        %v1783 = vpop.permute.xlu0 %1782
        %1786 = vset.pattern.permute.xlu0 0
        %1787 = vperm.xlu0 %1786, %v402
        %v1788 = vpop.permute.xlu0 %1787
        %v1790 = vmul.f32 %v1694, %v1713
        %v1791 = vmul.f32 %v1695, %v1718
        %v1792 = vmul.f32 %v1696, %v1723
        %v1793 = vmul.f32 %v1697, %v1728
        %v1794 = vmul.f32 %v1698, %v1733
        %v1795 = vmul.f32 %v1699, %v1738
        %v1796 = vmul.f32 %v1700, %v1743
        %v1797 = vmul.f32 %v1701, %v1748
        %v1798 = vmul.f32 %v1702, %v1753
        %v1799 = vmul.f32 %v1703, %v1758
        %v1800 = vmul.f32 %v1704, %v1763
        %v1801 = vmul.f32 %v1705, %v1768
        %v1802 = vmul.f32 %v1706, %v1773
        %v1803 = vmul.f32 %v1707, %v1778
        %v1804 = vmul.f32 %v1708, %v1783
        %v1805 = vmul.f32 %v1709, %v1788
        %v1806 = vpack.c.bf16 %v1791, %v1790
        %v1807 = vpack.c.bf16 %v1793, %v1792
        %v1808 = vpack.c.bf16 %v1795, %v1794
        %v1809 = vpack.c.bf16 %v1797, %v1796
        %v1810 = vpack.c.bf16 %v1799, %v1798
        %v1811 = vpack.c.bf16 %v1801, %v1800
        %v1812 = vpack.c.bf16 %v1803, %v1802
        %v1813 = vpack.c.bf16 %v1805, %v1804
        %1814 = vmatprep.subr.bf16.mxu0 0
        %1815 = vmatpush1.bf16.msra.mxu0 %v1813
        %1816 = vmatprep.subr.bf16.mxu0 0
        %1817 = vmatpush1.bf16.msra.mxu0 %v1812
        %1818 = vmatprep.subr.bf16.mxu0 0
        %1819 = vmatpush1.bf16.msra.mxu0 %v1811
        %1820 = vmatprep.subr.bf16.mxu0 0
        %1821 = vmatpush1.bf16.msra.mxu0 %v1810
        %1822 = vmatprep.subr.bf16.mxu0 0
        %1823 = vmatpush1.bf16.msra.mxu0 %v1809
        %1824 = vmatprep.subr.bf16.mxu0 0
        %1825 = vmatpush1.bf16.msra.mxu0 %v1808
        %1826 = vmatprep.subr.bf16.mxu0 0
        %1827 = vmatpush1.bf16.msra.mxu0 %v1807
        %1828 = vmatprep.subr.bf16.mxu0 0
        %1829 = vmatpush1.bf16.msra.mxu0 %v1806
        %1830 = vmatprep.subr.bf16.mxu0 0
        %1831 = vmatpush2.bf16.msra.mxu0 0
        %1832 = vmatprep.subr.bf16.mxu0 0
        %1833 = vmatpush2.bf16.msra.mxu0 0
        %1834 = vmatprep.subr.bf16.mxu0 0
        %1835 = vmatpush2.bf16.msra.mxu0 0
        %1836 = vmatprep.subr.bf16.mxu0 0
        %1837 = vmatpush2.bf16.msra.mxu0 0
        %1838 = vmatprep.subr.bf16.mxu0 0
        %1839 = vmatpush2.bf16.msra.mxu0 0
        %1840 = vmatprep.subr.bf16.mxu0 0
        %1841 = vmatpush2.bf16.msra.mxu0 0
        %1842 = vmatprep.subr.bf16.mxu0 0
        %1843 = vmatpush2.bf16.msra.mxu0 0
        %1844 = vmatprep.subr.bf16.mxu0 0
        %1845 = vmatpush2.bf16.msra.mxu0 0
        %1846 = vmatprep.mubr.bf16.mxu0 0
        %1847 = vmatmul.mubr.bf16.gmra.mxu0 %v1462
        %v1848 = vpop.f32.mrf.mxu0
        %v1849 = vadd.f32 0.0, %v1848
        %v1850 = vpop.f32.mrf.mxu0
        %v1851 = vpop.f32.mrf.mxu0
        %v1852 = vadd.f32 0.0, %v1851
        %v1853 = vpop.f32.mrf.mxu0
        %1854 = vmatprep.mubr.bf16.mxu0 0
        %1855 = vmatmul.mubr.bf16.gmra.mxu0 %v1463
        %v1856 = vpop.f32.mrf.mxu0
        %v1857 = vadd.f32 0.0, %v1856
        %v1858 = vpop.f32.mrf.mxu0
        %v1859 = vpop.f32.mrf.mxu0
        %v1860 = vadd.f32 0.0, %v1859
        %v1861 = vpop.f32.mrf.mxu0
        %1862 = vmatprep.mubr.bf16.mxu0 0
        %1863 = vmatmul.mubr.bf16.gmra.mxu0 %v1464
        %v1864 = vpop.f32.mrf.mxu0
        %v1865 = vadd.f32 0.0, %v1864
        %v1866 = vpop.f32.mrf.mxu0
        %v1867 = vpop.f32.mrf.mxu0
        %v1868 = vadd.f32 0.0, %v1867
        %v1869 = vpop.f32.mrf.mxu0
        %1870 = vmatprep.mubr.bf16.mxu0 0
        %1871 = vmatmul.mubr.bf16.gmra.mxu0 %v1465
        %v1872 = vpop.f32.mrf.mxu0
        %v1873 = vadd.f32 0.0, %v1872
        %v1874 = vpop.f32.mrf.mxu0
        %v1875 = vpop.f32.mrf.mxu0
        %v1876 = vadd.f32 0.0, %v1875
        %v1877 = vpop.f32.mrf.mxu0
        %1878 = vdwg.mxu0
        %v1879 = vld [vmem:[%s8] sm:$0xf]
        %v1880 = vld [vmem:[%s8 + $0x4] sm:$0xf]
        %v1881 = vld [vmem:[%s8 + $0x8] sm:$0xf]
        %v1882 = vld [vmem:[%s8 + $0xc] sm:$0xf]
        %v1883 = vld [vmem:[%s8 + $0x10] sm:$0xf]
        %v1884 = vld [vmem:[%s8 + $0x14] sm:$0xf]
        %v1885 = vld [vmem:[%s8 + $0x18] sm:$0xf]
        %v1886 = vld [vmem:[%s8 + $0x1c] sm:$0xf]
        %v1887 = vpack.c.bf16 %v1852, %v1849
        %v1888 = vpack.c.bf16 %v1860, %v1857
        %v1889 = vpack.c.bf16 %v1868, %v1865
        %v1890 = vpack.c.bf16 %v1876, %v1873
        %v1891 = vld [vmem:[%s9] sm:$0xff]
        %v1892 = vld [vmem:[%s9 + $0x8] sm:$0xff]
        %v1893 = vld [vmem:[%s9 + $0x10] sm:$0xff]
        %v1894 = vld [vmem:[%s9 + $0x18] sm:$0xff]
        %v1895 = vld [vmem:[%s9 + $0x20] sm:$0xff]
        %v1896 = vld [vmem:[%s9 + $0x28] sm:$0xff]
        %v1897 = vld [vmem:[%s9 + $0x30] sm:$0xff]
        %v1898 = vld [vmem:[%s9 + $0x38] sm:$0xff]
        %1900 = vset.pattern.permute.xlu0 0
        %1901 = vperm.xlu0 %1900, %v1891
        %v1902 = vpop.permute.xlu0 %1901
        %1905 = vset.pattern.permute.xlu0 0
        %1906 = vperm.xlu0 %1905, %v1892
        %v1907 = vpop.permute.xlu0 %1906
        %1910 = vset.pattern.permute.xlu0 0
        %1911 = vperm.xlu0 %1910, %v1893
        %v1912 = vpop.permute.xlu0 %1911
        %1915 = vset.pattern.permute.xlu0 0
        %1916 = vperm.xlu0 %1915, %v1894
        %v1917 = vpop.permute.xlu0 %1916
        %1920 = vset.pattern.permute.xlu0 0
        %1921 = vperm.xlu0 %1920, %v1895
        %v1922 = vpop.permute.xlu0 %1921
        %1925 = vset.pattern.permute.xlu0 0
        %1926 = vperm.xlu0 %1925, %v1896
        %v1927 = vpop.permute.xlu0 %1926
        %1930 = vset.pattern.permute.xlu0 0
        %1931 = vperm.xlu0 %1930, %v1897
        %v1932 = vpop.permute.xlu0 %1931
        %1935 = vset.pattern.permute.xlu0 0
        %1936 = vperm.xlu0 %1935, %v1898
        %v1937 = vpop.permute.xlu0 %1936
        %v1947 = vunpack.c.l.b16 %v1879
        %v1948 = vunpack.c.l.b16 %v1880
        %v1949 = vunpack.c.l.b16 %v1881
        %v1950 = vunpack.c.l.b16 %v1882
        %v1951 = vunpack.c.l.b16 %v1883
        %v1952 = vunpack.c.l.b16 %v1884
        %v1953 = vunpack.c.l.b16 %v1885
        %v1954 = vunpack.c.l.b16 %v1886
        %v1955 = vpack.c.b16 %v1948, %v1947
        %v1956 = vpack.c.b16 %v1950, %v1949
        %v1957 = vpack.c.b16 %v1952, %v1951
        %v1958 = vpack.c.b16 %v1954, %v1953
        %v1960 = vsel %vm431, %v1955, 0
        %v1963 = vsel %vm431, %v1956, 0
        %v1966 = vsel %vm431, %v1957, 0
        %v1969 = vsel %vm431, %v1958, 0
        %1971 = vmatprep.subr.bf16.mxu0 0
        %1972 = vmatpush1.bf16.msra.mxu0 0
        %1973 = vmatprep.subr.bf16.mxu0 0
        %1974 = vmatpush1.bf16.msra.mxu0 0
        %1975 = vmatprep.subr.bf16.mxu0 0
        %1976 = vmatpush1.bf16.msra.mxu0 0
        %1977 = vmatprep.subr.bf16.mxu0 0
        %1978 = vmatpush1.bf16.msra.mxu0 0
        %1979 = vmatprep.subr.bf16.mxu0 0
        %1980 = vmatpush1.bf16.msra.mxu0 %v1890
        %1981 = vmatprep.subr.bf16.mxu0 0
        %1982 = vmatpush1.bf16.msra.mxu0 %v1889
        %1983 = vmatprep.subr.bf16.mxu0 0
        %1984 = vmatpush1.bf16.msra.mxu0 %v1888
        %1985 = vmatprep.subr.bf16.mxu0 0
        %1986 = vmatpush1.bf16.msra.mxu0 %v1887
        %1987 = vmatprep.subr.bf16.mxu0 0
        %1988 = vmatpush2.bf16.msra.mxu0 0
        %1989 = vmatprep.subr.bf16.mxu0 0
        %1990 = vmatpush2.bf16.msra.mxu0 0
        %1991 = vmatprep.subr.bf16.mxu0 0
        %1992 = vmatpush2.bf16.msra.mxu0 0
        %1993 = vmatprep.subr.bf16.mxu0 0
        %1994 = vmatpush2.bf16.msra.mxu0 0
        %1995 = vmatprep.subr.bf16.mxu0 0
        %1996 = vmatpush2.bf16.msra.mxu0 0
        %1997 = vmatprep.subr.bf16.mxu0 0
        %1998 = vmatpush2.bf16.msra.mxu0 0
        %1999 = vmatprep.subr.bf16.mxu0 0
        %2000 = vmatpush2.bf16.msra.mxu0 0
        %2001 = vmatprep.subr.bf16.mxu0 0
        %2002 = vmatpush2.bf16.msra.mxu0 0
        %2003 = vmatprep.mubr.bf16.mxu0 0
        %2004 = vmatmul.mubr.bf16.gmra.mxu0 %v1960
        %v2005 = vpop.f32.mrf.mxu0
        %v2006 = vadd.f32 %v1902, %v2005
        %v2007 = vpop.f32.mrf.mxu0
        %v2008 = vpop.f32.mrf.mxu0
        %v2009 = vadd.f32 %v1907, %v2008
        %v2010 = vpop.f32.mrf.mxu0
        %2011 = vmatprep.mubr.bf16.mxu0 0
        %2012 = vmatmul.mubr.bf16.gmra.mxu0 %v1963
        %v2013 = vpop.f32.mrf.mxu0
        %v2014 = vadd.f32 %v1912, %v2013
        %v2015 = vpop.f32.mrf.mxu0
        %v2016 = vpop.f32.mrf.mxu0
        %v2017 = vadd.f32 %v1917, %v2016
        %v2018 = vpop.f32.mrf.mxu0
        %2019 = vmatprep.mubr.bf16.mxu0 0
        %2020 = vmatmul.mubr.bf16.gmra.mxu0 %v1966
        %v2021 = vpop.f32.mrf.mxu0
        %v2022 = vadd.f32 %v1922, %v2021
        %v2023 = vpop.f32.mrf.mxu0
        %v2024 = vpop.f32.mrf.mxu0
        %v2025 = vadd.f32 %v1927, %v2024
        %v2026 = vpop.f32.mrf.mxu0
        %2027 = vmatprep.mubr.bf16.mxu0 0
        %2028 = vmatmul.mubr.bf16.gmra.mxu0 %v1969
        %v2029 = vpop.f32.mrf.mxu0
        %v2030 = vadd.f32 %v1932, %v2029
        %v2031 = vpop.f32.mrf.mxu0
        %v2032 = vpop.f32.mrf.mxu0
        %v2033 = vadd.f32 %v1937, %v2032
        %v2034 = vpop.f32.mrf.mxu0
        %2035 = vdwg.mxu0
        %v2036 = vadd.f32 %v379, %v2006
        %v2037 = vadd.f32 %v380, %v2009
        %v2038 = vadd.f32 %v381, %v2014
        %v2039 = vadd.f32 %v382, %v2017
        %v2040 = vadd.f32 %v383, %v2022
        %v2041 = vadd.f32 %v384, %v2025
        %v2042 = vadd.f32 %v385, %v2030
        %v2043 = vadd.f32 %v386, %v2033
        %2044 = vst [vmem:[%s367] sm:$0xff] %v2036
        %2045 = vst [vmem:[%s367 + $0x8] sm:$0xff] %v2037
        %2046 = vst [vmem:[%s367 + $0x10] sm:$0xff] %v2038
        %2047 = vst [vmem:[%s367 + $0x18] sm:$0xff] %v2039
        %2048 = vst [vmem:[%s367 + $0x20] sm:$0xff] %v2040
        %2049 = vst [vmem:[%s367 + $0x28] sm:$0xff] %v2041
        %2050 = vst [vmem:[%s367 + $0x30] sm:$0xff] %v2042
        %2051 = vst [vmem:[%s367 + $0x38] sm:$0xff] %v2043
        %s2052 = sand.u32 %s252, 1
        %s2053 = scalar_lea.sflag [#allocation3], %s2052
        %s2054 = sand.u32 %s252, 1
        %s2055 = smul.addr %s2054, 64
        %s2056 = scalar_lea.vmem [#allocation2], %s2055
        // Predicated region
        $region61: #{tpu_custom_call.1} parent=59 // pred_check
          %p2057 = pneg %p262
        $region62: #{tpu_custom_call.1} parent=59 // pred_check_branch
          %2059 = sbr.rel (%p2057) target = $region64
        $region63: #{tpu_custom_call.1} parent=59 // pred_region
          %s2061 = ssub.s32 1024, 1024
          %2062 = vsyncadd %s2053, %s2061
          %s2063 = smul.addr %s24, 8
          %s2064 = smul.addr %s2063, 128
          %s2065 = scalar_lea.hbm %s10, %s2064
          %s2066 = sshll.u32 %s2056, 4
          %s2067 = int_to_ptr.vmem [resolvable:$true] %s2066
          %2072 = dma.vmem_to_hbm [thread:$0]  %s2067, 1024, %s2065, %s2053, 128, 128, 8
        $region64: #{tpu_custom_call.1} parent=59 // pred_fallthru
          _
      $region60: #{tpu_custom_call.1} parent=5 // pred_fallthru
        _
      %p2073 = scmp.le.s32.totalorder 2, %s19
      // Predicated region
      $region65: #{tpu_custom_call.1} parent=5 // pred_check
        %p2074 = pneg %p2073
      $region66: #{tpu_custom_call.1} parent=5 // pred_check_branch
        %2076 = sbr.rel (%p2074) target = $region68
      $region67: #{tpu_custom_call.1} parent=5 // pred_region
        %s2077 = ssub.s32 %s19, 2
        // Predicated region
        $region69: #{tpu_custom_call.1} parent=67 // pred_check
          %p2078 = pneg %p268
        $region70: #{tpu_custom_call.1} parent=67 // pred_check_branch
          %2080 = sbr.rel (%p2078) target = $region72
        $region71: #{tpu_custom_call.1} parent=67 // pred_region
          %s2081 = sand.u32 %s253, 1
          %s2082 = scalar_lea.sflag [#allocation3], %s2081
          %s2083 = sand.u32 %s253, 1
          %s2084 = smul.addr %s2083, 64
          %s2085 = scalar_lea.vmem [#allocation2], %s2084
          %2086 = dma.done %s2082, 1024
        $region72: #{tpu_custom_call.1} parent=67 // pred_fallthru
          _
      $region68: #{tpu_custom_call.1} parent=5 // pred_fallthru
        _
    $region6: #{tpu_custom_call.1} parent=1 // loop_footer
      %s23 = sadd.s32 1, %s19
    $region7: #{tpu_custom_call.1} parent=1 // loop_footer_branch
      %18 = sbr.rel target = $region3
    $region8: #{tpu_custom_call.1} parent=1 // loop_exit
      _
    %2087 = vsyncpa [#allocation3], 1
    %s2088 = scalar_lea.sflag [#allocation3], 1
    %2089 = vsyncpa %s2088, 1

</llo_original>
